<compile_context>
chip_gen: v5e
topology: v5e:2x2
jax: 0.10.0
libtpu: 0.0.40
codegen_flags: <defaults>
</compile_context>

<pallas_src>
import numpy as np
import jax
import jax.numpy as jnp
from jax import lax
from jax.experimental import pallas as pl
from jax.experimental.pallas import tpu as pltpu


# ----------------------------- in-kernel helpers -----------------------------

def _cmm_left(a_r, a_sum, a_dif, b_r, b_i):
    """(a_r + i*a_i) @ (b_r + i*b_i), LEFT operand constant.
    a_sum = a_r + a_i, a_dif = a_i - a_r precomputed host-side -> 3 MXU matmuls."""
    k1 = jnp.dot(a_r, b_r + b_i, preferred_element_type=jnp.float32)
    k2 = jnp.dot(a_sum, b_i, preferred_element_type=jnp.float32)
    k3 = jnp.dot(a_dif, b_r, preferred_element_type=jnp.float32)
    return k1 - k2, k1 + k3


def _cmm_left_conj(a_r, a_sum, a_dif, b_r, b_i):
    """conj(a) @ (b_r + i*b_i) using the SAME forward combos (signs folded in)."""
    k1 = jnp.dot(a_r, b_r + b_i, preferred_element_type=jnp.float32)
    k2 = jnp.dot(a_dif, b_i, preferred_element_type=jnp.float32)   # (im-re)@b_i
    k3 = jnp.dot(a_sum, b_r, preferred_element_type=jnp.float32)   # (re+im)@b_r
    return k1 + k2, k1 - k3


def _cmm_right(a_r, a_i, b_r, b_sum, b_dif):
    """(a_r + i*a_i) @ (b_r + i*b_i), RIGHT operand constant. 3 MXU matmuls."""
    k1 = jnp.dot(a_r + a_i, b_r, preferred_element_type=jnp.float32)
    k2 = jnp.dot(a_i, b_sum, preferred_element_type=jnp.float32)
    k3 = jnp.dot(a_r, b_dif, preferred_element_type=jnp.float32)
    return k1 - k2, k1 + k3


def _cmm_right_conj(a_r, a_i, b_r, b_sum, b_dif):
    """(a_r + i*a_i) @ conj(b) using the SAME forward combos (signs folded in)."""
    k1 = jnp.dot(a_r + a_i, b_r, preferred_element_type=jnp.float32)
    k2 = jnp.dot(a_i, b_dif, preferred_element_type=jnp.float32)
    k3 = jnp.dot(a_r, b_sum, preferred_element_type=jnp.float32)
    return k1 + k2, k1 - k3


def _sum_all_keepdims(t):
    """Full (H,W) reduction kept rank-2 (no rank-0 intermediates) -> (1,1)."""
    return jnp.sum(jnp.sum(t, axis=1, keepdims=True), axis=0, keepdims=True)


# --------------------------------- kernels -----------------------------------

def _grad_kernel(xr_ref, xi_ref, smr_ref, smi_ref, br_ref, bi_ref, m_ref,
                 fhr_ref, fhs_ref, fhd_ref, fwr_ref, fws_ref, fwd_ref,
                 gxr_ref, gxi_ref, obj_ref):
    """Fused per (batch, coil) step:
         r      = mask * (Fh @ (x*S_c) @ Fw^T) - b_c        (kept in VMEM only)
         obj   += sum(|r|^2)                                  (per-batch scalar acc)
         gx    += conj(S_c) * (conj(Fh) @ (mask*r) @ conj(Fw)^T)
       Grid = (B, C); coil is the sequential reduction axis for all accumulators."""
    c = pl.program_id(1)
    f32 = jnp.float32

    xr = xr_ref[...].astype(f32)
    xi = xi_ref[...].astype(f32)
    smr = smr_ref[...].astype(f32)
    smi = smi_ref[...].astype(f32)
    m = m_ref[...].astype(f32)
    md = fhr_ref.dtype                       # MXU-operand dtype (compute_dtype)

    # S: coil sensitivity weighting (complex elementwise multiply, f32 on the VPU)
    sr = xr * smr - xi * smi
    si = xr * smi + xi * smr

    # forward centered ortho DFT:  u = Fh @ s @ Fw^T   (Gauss 3-matmul each)
    tr, ti = _cmm_left(fhr_ref[...], fhs_ref[...], fhd_ref[...],
                       sr.astype(md), si.astype(md))
    ur, ui = _cmm_right(tr.astype(md), ti.astype(md),
                        fwr_ref[...], fws_ref[...], fwd_ref[...])

    # residual r = mask*u - b   (never leaves VMEM)
    rr = ur * m - br_ref[...].astype(f32)
    ri = ui * m - bi_ref[...].astype(f32)
    obj_part = _sum_all_keepdims(rr * rr + ri * ri)

    # adjoint A^* = S^H F^H M: inverse transform = conj(forward), sign-folded combos
    zr = rr * m
    zi = ri * m
    tr2, ti2 = _cmm_left_conj(fhr_ref[...], fhs_ref[...], fhd_ref[...],
                              zr.astype(md), zi.astype(md))
    ur2, ui2 = _cmm_right_conj(tr2.astype(md), ti2.astype(md),
                               fwr_ref[...], fws_ref[...], fwd_ref[...])

    # S^H contribution: conj(smap) * u2
    gxr_c = smr * ur2 + smi * ui2
    gxi_c = smr * ui2 - smi * ur2

    @pl.when(c == 0)
    def _():                                  # first coil writes directly
        gxr_ref[...] = gxr_c
        gxi_ref[...] = gxi_c
        obj_ref[...] = obj_part

    @pl.when(c > 0)
    def _():                                  # remaining coils accumulate
        gxr_ref[...] += gxr_c
        gxi_ref[...] += gxi_c
        obj_ref[...] += obj_part


def _applyA_q_kernel(xr_ref, xi_ref, smr_ref, smi_ref, m_ref,
                     fhr_ref, fhs_ref, fhd_ref, fwr_ref, fws_ref, fwd_ref,
                     q_ref):
    """Per (batch, coil):  y = mask * (Fh @ (gx*S_c) @ Fw^T);  q += sum(|y|^2).
    Only the scalar the line search needs is emitted (no (B,C,H,W) output)."""
    c = pl.program_id(1)
    f32 = jnp.float32
    xr = xr_ref[...].astype(f32)
    xi = xi_ref[...].astype(f32)
    smr = smr_ref[...].astype(f32)
    smi = smi_ref[...].astype(f32)
    m = m_ref[...].astype(f32)
    md = fhr_ref.dtype

    sr = xr * smr - xi * smi
    si = xr * smi + xi * smr
    tr, ti = _cmm_left(fhr_ref[...], fhs_ref[...], fhd_ref[...],
                       sr.astype(md), si.astype(md))
    ur, ui = _cmm_right(tr.astype(md), ti.astype(md),
                        fwr_ref[...], fws_ref[...], fwd_ref[...])
    yr = ur * m
    yi = ui * m
    q_part = _sum_all_keepdims(yr * yr + yi * yi)

    @pl.when(c == 0)
    def _(): q_ref[...] = q_part

    @pl.when(c > 0)
    def _(): q_ref[...] += q_part


# ------------------------------- pallas wrappers ------------------------------

def _vmem_limit_bytes(H, W, itemsize):
    """Explicit scoped-VMEM request derived from the block sizes (+ headroom)."""
    stream = 2 * (2 + 4) * H * W * itemsize                 # x, sMaps, b (double-buf)
    consts = 2 * (H * W * 4 + 3 * (H * H + W * W) * itemsize)  # mask + 6 DFT combos
    outs = 2 * (2 * H * W * 4 + 2 * 4)                      # gx re/im + scalar accs
    interm = 16 * H * W * 4                                 # f32 intermediates
    need = int((stream + consts + outs + interm) * 1.5) + (2 << 20)
    return int(min(max(need, 32 * 1024 * 1024), 64 * 1024 * 1024))


def _grad_pallas(xr, xi, smr, smi, br, bi, mask, fwdH, fwdW):
    """Returns (gxr, gxi, obj_parts): gradient A^*(A x - b) and per-batch sum|r|^2."""
    B, C, H, W = smr.shape
    itemsize = jnp.dtype(smr.dtype).itemsize

    b_spec = lambda: pl.BlockSpec((None, H, W), lambda b, c: (b, 0, 0))
    bc_spec = lambda: pl.BlockSpec((None, None, H, W), lambda b, c: (b, c, 0, 0))
    cst = lambda n, k: pl.BlockSpec((n, k), lambda b, c: (0, 0))

    in_specs = ([b_spec(), b_spec(),                 # x re/im
                 bc_spec(), bc_spec(),               # sMaps re/im
                 bc_spec(), bc_spec(),               # b re/im
                 cst(H, W)]                          # mask
                + [cst(H, H) for _ in range(3)]      # forward Fh combos
                + [cst(W, W) for _ in range(3)])     # forward Fw^T combos

    out_shape = (jax.ShapeDtypeStruct((B, H, W), jnp.float32),
                 jax.ShapeDtypeStruct((B, H, W), jnp.float32),
                 jax.ShapeDtypeStruct((B, 1, 1), jnp.float32))
    out_specs = (b_spec(), b_spec(),
                 pl.BlockSpec((None, 1, 1), lambda b, c: (b, 0, 0)))

    return pl.pallas_call(
        _grad_kernel,
        out_shape=out_shape,
        grid=(B, C),
        in_specs=in_specs,
        out_specs=out_specs,
        compiler_params=pltpu.CompilerParams(
            dimension_semantics=("parallel", "arbitrary"),   # coil = reduction
            vmem_limit_bytes=_vmem_limit_bytes(H, W, itemsize)),
    )(xr, xi, smr, smi, br, bi, mask, *fwdH, *fwdW)


def _applyA_q_pallas(xr, xi, smr, smi, mask, fwdH, fwdW):
    """Returns per-batch q_parts = sum over coils of ||A gx||^2 contributions."""
    B, C, H, W = smr.shape
    itemsize = jnp.dtype(smr.dtype).itemsize

    b_spec = lambda: pl.BlockSpec((None, H, W), lambda b, c: (b, 0, 0))
    bc_spec = lambda: pl.BlockSpec((None, None, H, W), lambda b, c: (b, c, 0, 0))
    cst = lambda n, k: pl.BlockSpec((n, k), lambda b, c: (0, 0))

    in_specs = ([b_spec(), b_spec(),
                 bc_spec(), bc_spec(),
                 cst(H, W)]
                + [cst(H, H) for _ in range(3)]
                + [cst(W, W) for _ in range(3)])

    return pl.pallas_call(
        _applyA_q_kernel,
        out_shape=jax.ShapeDtypeStruct((B, 1, 1), jnp.float32),
        grid=(B, C),
        in_specs=in_specs,
        out_specs=pl.BlockSpec((None, 1, 1), lambda b, c: (b, 0, 0)),
        compiler_params=pltpu.CompilerParams(
            dimension_semantics=("parallel", "arbitrary"),   # coil = reduction
            vmem_limit_bytes=_vmem_limit_bytes(H, W, itemsize)),
    )(xr, xi, smr, smi, mask, *fwdH, *fwdW)


# ------------------------------ parameter setup -------------------------------

def _centered_dft_matrix(n):
    """Matrix M with fftshift(fft(ifftshift(v), norm='ortho')) == M @ v."""
    eye = jnp.eye(n, dtype=jnp.complex64)
    f = jnp.fft.fft(jnp.fft.ifftshift(eye, axes=0), axis=0, norm='ortho')
    f = jnp.fft.fftshift(f, axes=0)
    return jnp.real(f).astype(jnp.float32), jnp.imag(f).astype(jnp.float32)


def _gauss_combos(re, im, dtype):
    """Constant-side combinations for the 3-matmul (Gauss) complex product."""
    return (re.astype(dtype), (re + im).astype(dtype), (im - re).astype(dtype))


# --------------------------------- forward ------------------------------------

def grad_desc_forward(x, sMaps, mask, b, alpha=0.1, linesearch=True,
                      compute_dtype=jnp.float32):
    """JAX/Pallas equivalent of grad_desc(alpha, linesearch).forward(x, sMaps, mask, b).
    W / Wt operators are identity (module defaults).

    compute_dtype=jnp.bfloat16 -> bf16 MXU operands + halved sMaps/b DMA (v6e/v7x);
    element-wise math always stays f32 (v5e-safe).  Default f32 for the 1e-3 check.
    """
    B, H, W, C = sMaps.shape
    cd = compute_dtype

    xr = jnp.real(x).astype(cd)
    xi = jnp.imag(x).astype(cd)
    smr = jnp.real(sMaps).astype(cd).transpose(0, 3, 1, 2)
    smi = jnp.imag(sMaps).astype(cd).transpose(0, 3, 1, 2)
    br = jnp.real(b).astype(cd).transpose(0, 3, 1, 2)
    bi = jnp.imag(b).astype(cd).transpose(0, 3, 1, 2)
    m = mask.astype(jnp.float32)

    # Forward centered ortho DFT combos only; the centered ortho DFT matrix is
    # symmetric + unitary so the inverse is conj(forward) — realized in-kernel.
    fhr, fhi = _centered_dft_matrix(H)
    fwr, fwi = _centered_dft_matrix(W)
    fwdH = _gauss_combos(fhr, fhi, cd)            # Fh   (left operand)
    fwdW = _gauss_combos(fwr.T, fwi.T, cd)        # Fw^T (right operand)

    # One fused kernel: gx = A^*(A x - b) and per-batch sum |A x - b|^2
    gxr, gxi, obj_parts = _grad_pallas(xr, xi, smr, smi, br, bi, m, fwdH, fwdW)

    gx_norm2 = jnp.sum(gxr * gxr) + jnp.sum(gxi * gxi)

    if linesearch:
        # obj(x - a*gx) = 0.5*||r - a*A gx||^2
        #               = obj_x - a*<r, A gx> + 0.5*a^2*||A gx||^2
        # and <r, A gx> = <A^H r, gx> = ||gx||^2 exactly (gx = A^H r)  ->  pure scalar
        # backtracking recurrence; the 250-iteration loop touches no arrays.
        q_parts = _applyA_q_pallas(gxr.astype(cd), gxi.astype(cd), smr, smi, m,
                                   fwdH, fwdW)
        obj_x = 0.5 * jnp.sum(obj_parts)
        q_aa = jnp.sum(q_parts)

        rho, cst = jnp.float32(0.9), jnp.float32(0.9)

        def cond(st):
            it, _, _, done = st
            return jnp.logical_and(it < 250, jnp.logical_not(done))

        def body(st):
            it, a, _, _ = st
            obj_new = obj_x - a * gx_norm2 + 0.5 * a * a * q_aa
            accept = obj_new < obj_x - a * cst * gx_norm2
            # last tried alpha is kept even if Armijo never accepts (matches torch loop)
            return (it + 1, jnp.where(accept, a, a * rho), a, accept)

        init = (jnp.int32(0), jnp.float32(0.5), jnp.float32(0.5), jnp.bool_(False))
        _, _, alpha_used, _ = lax.while_loop(cond, body, init)
    else:
        alpha_used = jnp.float32(alpha)

    xnr = jnp.real(x).astype(jnp.float32) - alpha_used * gxr
    xni = jnp.imag(x).astype(jnp.float32) - alpha_used * gxi
    return (xnr + 1j * xni).astype(jnp.complex64)


# ------------------------- pure-JAX reference (for check) ---------------------

def _ref_forward(x, sMaps, mask, b):
    ax = (-3, -2)
    cfft = lambda v: jnp.fft.fftshift(jnp.fft.fftn(jnp.fft.ifftshift(v, axes=ax),
                                                   axes=ax, norm='ortho'), axes=ax)
    cifft = lambda v: jnp.fft.fftshift(jnp.fft.ifftn(jnp.fft.ifftshift(v, axes=ax),
                                                     axes=ax, norm='ortho'), axes=ax)
    m4 = mask[None, :, :, None]
    A = lambda v: cfft(v[..., None] * sMaps) * m4
    At = lambda v: jnp.sum(jnp.conj(sMaps) * cifft(v * m4), axis=-1)
    r = A(x) - b
    gx = At(r)
    gxn = jnp.sum(jnp.abs(gx) ** 2)
    obj_x = 0.5 * jnp.sum(jnp.abs(r) ** 2)
    Agx = A(gx)
    alpha, alpha_used, rho, c, it = 0.5, 0.5, 0.9, 0.9, 0
    while it < 250:
        it += 1
        alpha_used = alpha
        d = r - alpha * Agx
        obj_new = 0.5 * jnp.sum(jnp.abs(d) ** 2)
        if float(obj_new) < float(obj_x - alpha * c * gxn):
            break
        alpha *= rho
    return x - alpha_used * gx


# ----------------------------------- main --------------------------------------

if __name__ == "__main__":
    B, H, W, C = 2, 16, 16, 4
    key = jax.random.PRNGKey(0)
    k = jax.random.split(key, 7)
    x = (jax.random.normal(k[0], (B, H, W))
         + 1j * jax.random.normal(k[1], (B, H, W))).astype(jnp.complex64)
    sMaps = (0.5 * (jax.random.normal(k[2], (B, H, W, C))
                    + 1j * jax.random.normal(k[3], (B, H, W, C)))).astype(jnp.complex64)
    b = (jax.random.normal(k[4], (B, H, W, C))
         + 1j * jax.random.normal(k[5], (B, H, W, C))).astype(jnp.complex64)
    mask = (jax.random.uniform(k[6], (H, W)) < 0.6).astype(jnp.float32)

    fwd_fn = jax.jit(grad_desc_forward,
                     static_argnames=("alpha", "linesearch", "compute_dtype"))
    out = jax.block_until_ready(fwd_fn(x, sMaps, mask, b))

    assert out.shape == (B, H, W) and out.dtype == jnp.complex64
    ref = _ref_forward(x, sMaps, mask, b)
    np.testing.assert_allclose(np.asarray(out), np.asarray(ref), rtol=1e-3, atol=1e-3)

    print("KERNEL_OK")
</pallas_src>

<mosaic_0001>
module attributes {stable_mosaic.version = 11 : i64} {
  func.func @_applyA_q_kernel(%arg0: i32, %arg1: i32, %arg2: memref<1x16x16xf32, #tpu.memory_space<vmem>>, %arg3: memref<1x16x16xf32, #tpu.memory_space<vmem>>, %arg4: memref<1x1x16x16xf32, #tpu.memory_space<vmem>>, %arg5: memref<1x1x16x16xf32, #tpu.memory_space<vmem>>, %arg6: memref<16x16xf32, #tpu.memory_space<vmem>>, %arg7: memref<16x16xf32, #tpu.memory_space<vmem>>, %arg8: memref<16x16xf32, #tpu.memory_space<vmem>>, %arg9: memref<16x16xf32, #tpu.memory_space<vmem>>, %arg10: memref<16x16xf32, #tpu.memory_space<vmem>>, %arg11: memref<16x16xf32, #tpu.memory_space<vmem>>, %arg12: memref<16x16xf32, #tpu.memory_space<vmem>>, %arg13: memref<1x1x1xf32, #tpu.memory_space<vmem>>) attributes {dimension_semantics = [#tpu.dimension_semantics<parallel>, #tpu.dimension_semantics<arbitrary>], iteration_bounds = array<i64: 2, 4>, scalar_prefetch = 0 : i64, scratch_operands = 0 : i64, tpu.core_type = #tpu.core_type<tc>, window_params = [{transform_indices = @transform_0, window_bounds = array<i64: 1, 16, 16>}, {transform_indices = @transform_1, window_bounds = array<i64: 1, 16, 16>}, {transform_indices = @transform_2, window_bounds = array<i64: 1, 1, 16, 16>}, {transform_indices = @transform_3, window_bounds = array<i64: 1, 1, 16, 16>}, {pipeline_mode = #tpu.pipeline_mode<synchronous>, transform_indices = @transform_4, window_bounds = array<i64: 16, 16>}, {pipeline_mode = #tpu.pipeline_mode<synchronous>, transform_indices = @transform_5, window_bounds = array<i64: 16, 16>}, {pipeline_mode = #tpu.pipeline_mode<synchronous>, transform_indices = @transform_6, window_bounds = array<i64: 16, 16>}, {pipeline_mode = #tpu.pipeline_mode<synchronous>, transform_indices = @transform_7, window_bounds = array<i64: 16, 16>}, {pipeline_mode = #tpu.pipeline_mode<synchronous>, transform_indices = @transform_8, window_bounds = array<i64: 16, 16>}, {pipeline_mode = #tpu.pipeline_mode<synchronous>, transform_indices = @transform_9, window_bounds = array<i64: 16, 16>}, {pipeline_mode = #tpu.pipeline_mode<synchronous>, transform_indices = @transform_10, window_bounds = array<i64: 16, 16>}, {transform_indices = @transform_11, window_bounds = array<i64: 1, 1, 1>}]} {
    %c0 = arith.constant 0 : index
    %c0_0 = arith.constant 0 : index
    %c0_1 = arith.constant 0 : index
    %0 = vector.load %arg2[%c0, %c0_0, %c0_1] : memref<1x16x16xf32, #tpu.memory_space<vmem>>, vector<1x16x16xf32>
    %1 = vector.shape_cast %0 : vector<1x16x16xf32> to vector<16x16xf32>
    %c0_2 = arith.constant 0 : index
    %c0_3 = arith.constant 0 : index
    %c0_4 = arith.constant 0 : index
    %2 = vector.load %arg3[%c0_2, %c0_3, %c0_4] : memref<1x16x16xf32, #tpu.memory_space<vmem>>, vector<1x16x16xf32>
    %3 = vector.shape_cast %2 : vector<1x16x16xf32> to vector<16x16xf32>
    %c0_5 = arith.constant 0 : index
    %c0_6 = arith.constant 0 : index
    %c0_7 = arith.constant 0 : index
    %c0_8 = arith.constant 0 : index
    %4 = vector.load %arg4[%c0_5, %c0_6, %c0_7, %c0_8] : memref<1x1x16x16xf32, #tpu.memory_space<vmem>>, vector<1x1x16x16xf32>
    %5 = vector.shape_cast %4 : vector<1x1x16x16xf32> to vector<16x16xf32>
    %c0_9 = arith.constant 0 : index
    %c0_10 = arith.constant 0 : index
    %c0_11 = arith.constant 0 : index
    %c0_12 = arith.constant 0 : index
    %6 = vector.load %arg5[%c0_9, %c0_10, %c0_11, %c0_12] : memref<1x1x16x16xf32, #tpu.memory_space<vmem>>, vector<1x1x16x16xf32>
    %7 = vector.shape_cast %6 : vector<1x1x16x16xf32> to vector<16x16xf32>
    %c0_13 = arith.constant 0 : index
    %c0_14 = arith.constant 0 : index
    %8 = vector.load %arg6[%c0_13, %c0_14] : memref<16x16xf32, #tpu.memory_space<vmem>>, vector<16x16xf32>
    %9 = arith.mulf %1, %5 : vector<16x16xf32>
    %10 = arith.mulf %3, %7 : vector<16x16xf32>
    %11 = arith.subf %9, %10 : vector<16x16xf32>
    %12 = arith.mulf %1, %7 : vector<16x16xf32>
    %13 = arith.mulf %3, %5 : vector<16x16xf32>
    %14 = arith.addf %12, %13 : vector<16x16xf32>
    %c0_15 = arith.constant 0 : index
    %c0_16 = arith.constant 0 : index
    %15 = vector.load %arg7[%c0_15, %c0_16] : memref<16x16xf32, #tpu.memory_space<vmem>>, vector<16x16xf32>
    %c0_17 = arith.constant 0 : index
    %c0_18 = arith.constant 0 : index
    %16 = vector.load %arg8[%c0_17, %c0_18] : memref<16x16xf32, #tpu.memory_space<vmem>>, vector<16x16xf32>
    %c0_19 = arith.constant 0 : index
    %c0_20 = arith.constant 0 : index
    %17 = vector.load %arg9[%c0_19, %c0_20] : memref<16x16xf32, #tpu.memory_space<vmem>>, vector<16x16xf32>
    %18 = arith.addf %11, %14 : vector<16x16xf32>
    %cst = arith.constant dense<0.000000e+00> : vector<16x16xf32>
    %19 = tpu.matmul %15, %18, %cst {dimension_numbers = #tpu.dot_dimension_numbers<[1], [0], [0], [1], [0, 0, 1, 1], [], []>} : vector<16x16xf32>, vector<16x16xf32>, vector<16x16xf32> -> vector<16x16xf32>
    %cst_21 = arith.constant dense<0.000000e+00> : vector<16x16xf32>
    %20 = tpu.matmul %16, %14, %cst_21 {dimension_numbers = #tpu.dot_dimension_numbers<[1], [0], [0], [1], [0, 0, 1, 1], [], []>} : vector<16x16xf32>, vector<16x16xf32>, vector<16x16xf32> -> vector<16x16xf32>
    %cst_22 = arith.constant dense<0.000000e+00> : vector<16x16xf32>
    %21 = tpu.matmul %17, %11, %cst_22 {dimension_numbers = #tpu.dot_dimension_numbers<[1], [0], [0], [1], [0, 0, 1, 1], [], []>} : vector<16x16xf32>, vector<16x16xf32>, vector<16x16xf32> -> vector<16x16xf32>
    %22 = arith.subf %19, %20 : vector<16x16xf32>
    %23 = arith.addf %19, %21 : vector<16x16xf32>
    %c0_23 = arith.constant 0 : index
    %c0_24 = arith.constant 0 : index
    %24 = vector.load %arg10[%c0_23, %c0_24] : memref<16x16xf32, #tpu.memory_space<vmem>>, vector<16x16xf32>
    %c0_25 = arith.constant 0 : index
    %c0_26 = arith.constant 0 : index
    %25 = vector.load %arg11[%c0_25, %c0_26] : memref<16x16xf32, #tpu.memory_space<vmem>>, vector<16x16xf32>
    %c0_27 = arith.constant 0 : index
    %c0_28 = arith.constant 0 : index
    %26 = vector.load %arg12[%c0_27, %c0_28] : memref<16x16xf32, #tpu.memory_space<vmem>>, vector<16x16xf32>
    %27 = arith.addf %22, %23 : vector<16x16xf32>
    %cst_29 = arith.constant dense<0.000000e+00> : vector<16x16xf32>
    %28 = tpu.matmul %27, %24, %cst_29 {dimension_numbers = #tpu.dot_dimension_numbers<[1], [0], [0], [1], [0, 0, 1, 1], [], []>} : vector<16x16xf32>, vector<16x16xf32>, vector<16x16xf32> -> vector<16x16xf32>
    %cst_30 = arith.constant dense<0.000000e+00> : vector<16x16xf32>
    %29 = tpu.matmul %23, %25, %cst_30 {dimension_numbers = #tpu.dot_dimension_numbers<[1], [0], [0], [1], [0, 0, 1, 1], [], []>} : vector<16x16xf32>, vector<16x16xf32>, vector<16x16xf32> -> vector<16x16xf32>
    %cst_31 = arith.constant dense<0.000000e+00> : vector<16x16xf32>
    %30 = tpu.matmul %22, %26, %cst_31 {dimension_numbers = #tpu.dot_dimension_numbers<[1], [0], [0], [1], [0, 0, 1, 1], [], []>} : vector<16x16xf32>, vector<16x16xf32>, vector<16x16xf32> -> vector<16x16xf32>
    %31 = arith.subf %28, %29 : vector<16x16xf32>
    %32 = arith.addf %28, %30 : vector<16x16xf32>
    %33 = arith.mulf %31, %8 : vector<16x16xf32>
    %34 = arith.mulf %32, %8 : vector<16x16xf32>
    %35 = arith.mulf %33, %33 : vector<16x16xf32>
    %36 = arith.mulf %34, %34 : vector<16x16xf32>
    %37 = arith.addf %35, %36 : vector<16x16xf32>
    %cst_32 = arith.constant dense<0.000000e+00> : vector<16xf32>
    %38 = vector.multi_reduction <add>, %37, %cst_32 [1] : vector<16x16xf32> to vector<16xf32>
    %39 = vector.shape_cast %38 : vector<16xf32> to vector<16x1xf32>
    %cst_33 = arith.constant dense<0.000000e+00> : vector<1xf32>
    %40 = vector.multi_reduction <add>, %39, %cst_33 [0] : vector<16x1xf32> to vector<1xf32>
    %41 = vector.shape_cast %40 : vector<1xf32> to vector<1x1xf32>
    %c0_i32 = arith.constant 0 : i32
    %42 = arith.cmpi eq, %arg1, %c0_i32 : i32
    %43 = arith.extui %42 : i1 to i32
    %c0_i32_34 = arith.constant 0 : i32
    %44 = arith.cmpi ne, %43, %c0_i32_34 : i32
    scf.if %44 {
      %c0_37 = arith.constant 0 : index
      %c0_38 = arith.constant 0 : index
      %c0_39 = arith.constant 0 : index
      %48 = vector.load %arg13[%c0_37, %c0_38, %c0_39] : memref<1x1x1xf32, #tpu.memory_space<vmem>>, vector<1x1x1xf32>
      %49 = vector.shape_cast %48 : vector<1x1x1xf32> to vector<1x1xf32>
      %50 = vector.shape_cast %41 : vector<1x1xf32> to vector<1x1x1xf32>
      tpu.vector_store %arg13[%c0_37, %c0_38, %c0_39], %50 {strides = array<i32>} : memref<1x1x1xf32, #tpu.memory_space<vmem>>, vector<1x1x1xf32>,
    } else {
    }
    %c0_i32_35 = arith.constant 0 : i32
    %45 = arith.cmpi sgt, %arg1, %c0_i32_35 : i32
    %46 = arith.extui %45 : i1 to i32
    %c0_i32_36 = arith.constant 0 : i32
    %47 = arith.cmpi ne, %46, %c0_i32_36 : i32
    scf.if %47 {
      %c0_37 = arith.constant 0 : index
      %c0_38 = arith.constant 0 : index
      %c0_39 = arith.constant 0 : index
      %48 = vector.load %arg13[%c0_37, %c0_38, %c0_39] : memref<1x1x1xf32, #tpu.memory_space<vmem>>, vector<1x1x1xf32>
      %49 = vector.shape_cast %48 : vector<1x1x1xf32> to vector<1x1xf32>
      %50 = arith.addf %49, %41 : vector<1x1xf32>
      %c0_40 = arith.constant 0 : index
      %c0_41 = arith.constant 0 : index
      %c0_42 = arith.constant 0 : index
      %51 = vector.load %arg13[%c0_40, %c0_41, %c0_42] : memref<1x1x1xf32, #tpu.memory_space<vmem>>, vector<1x1x1xf32>
      %52 = vector.shape_cast %51 : vector<1x1x1xf32> to vector<1x1xf32>
      %53 = vector.shape_cast %50 : vector<1x1xf32> to vector<1x1x1xf32>
      tpu.vector_store %arg13[%c0_40, %c0_41, %c0_42], %53 {strides = array<i32>} : memref<1x1x1xf32, #tpu.memory_space<vmem>>, vector<1x1x1xf32>,
    } else {
    }
    return
  }
  func.func @transform_0(%arg0: i32, %arg1: i32) -> (i32, i32, i32) {
    %c0_i32 = arith.constant 0 : i32
    %c0_i32_0 = arith.constant 0 : i32
    %c0_i32_1 = arith.constant 0 : i32
    return %arg0, %c0_i32, %c0_i32_0 : i32, i32, i32
  }
  func.func @transform_1(%arg0: i32, %arg1: i32) -> (i32, i32, i32) {
    %c0_i32 = arith.constant 0 : i32
    %c0_i32_0 = arith.constant 0 : i32
    %c0_i32_1 = arith.constant 0 : i32
    return %arg0, %c0_i32, %c0_i32_0 : i32, i32, i32
  }
  func.func @transform_2(%arg0: i32, %arg1: i32) -> (i32, i32, i32, i32) {
    %c0_i32 = arith.constant 0 : i32
    %c0_i32_0 = arith.constant 0 : i32
    %c0_i32_1 = arith.constant 0 : i32
    return %arg0, %arg1, %c0_i32, %c0_i32_0 : i32, i32, i32, i32
  }
  func.func @transform_3(%arg0: i32, %arg1: i32) -> (i32, i32, i32, i32) {
    %c0_i32 = arith.constant 0 : i32
    %c0_i32_0 = arith.constant 0 : i32
    %c0_i32_1 = arith.constant 0 : i32
    return %arg0, %arg1, %c0_i32, %c0_i32_0 : i32, i32, i32, i32
  }
  func.func @transform_4(%arg0: i32, %arg1: i32) -> (i32, i32) {
    %c0_i32 = arith.constant 0 : i32
    %c0_i32_0 = arith.constant 0 : i32
    %c0_i32_1 = arith.constant 0 : i32
    return %c0_i32, %c0_i32_0 : i32, i32
  }
  func.func @transform_5(%arg0: i32, %arg1: i32) -> (i32, i32) {
    %c0_i32 = arith.constant 0 : i32
    %c0_i32_0 = arith.constant 0 : i32
    %c0_i32_1 = arith.constant 0 : i32
    return %c0_i32, %c0_i32_0 : i32, i32
  }
  func.func @transform_6(%arg0: i32, %arg1: i32) -> (i32, i32) {
    %c0_i32 = arith.constant 0 : i32
    %c0_i32_0 = arith.constant 0 : i32
    %c0_i32_1 = arith.constant 0 : i32
    return %c0_i32, %c0_i32_0 : i32, i32
  }
  func.func @transform_7(%arg0: i32, %arg1: i32) -> (i32, i32) {
    %c0_i32 = arith.constant 0 : i32
    %c0_i32_0 = arith.constant 0 : i32
    %c0_i32_1 = arith.constant 0 : i32
    return %c0_i32, %c0_i32_0 : i32, i32
  }
  func.func @transform_8(%arg0: i32, %arg1: i32) -> (i32, i32) {
    %c0_i32 = arith.constant 0 : i32
    %c0_i32_0 = arith.constant 0 : i32
    %c0_i32_1 = arith.constant 0 : i32
    return %c0_i32, %c0_i32_0 : i32, i32
  }
  func.func @transform_9(%arg0: i32, %arg1: i32) -> (i32, i32) {
    %c0_i32 = arith.constant 0 : i32
    %c0_i32_0 = arith.constant 0 : i32
    %c0_i32_1 = arith.constant 0 : i32
    return %c0_i32, %c0_i32_0 : i32, i32
  }
  func.func @transform_10(%arg0: i32, %arg1: i32) -> (i32, i32) {
    %c0_i32 = arith.constant 0 : i32
    %c0_i32_0 = arith.constant 0 : i32
    %c0_i32_1 = arith.constant 0 : i32
    return %c0_i32, %c0_i32_0 : i32, i32
  }
  func.func @transform_11(%arg0: i32, %arg1: i32) -> (i32, i32, i32) {
    %c0_i32 = arith.constant 0 : i32
    %c0_i32_0 = arith.constant 0 : i32
    %c0_i32_1 = arith.constant 0 : i32
    return %arg0, %c0_i32, %c0_i32_0 : i32, i32, i32
  }
}

module attributes {stable_mosaic.version = 11 : i64} {
  func.func @_grad_kernel(%arg0: i32, %arg1: i32, %arg2: memref<1x16x16xf32, #tpu.memory_space<vmem>>, %arg3: memref<1x16x16xf32, #tpu.memory_space<vmem>>, %arg4: memref<1x1x16x16xf32, #tpu.memory_space<vmem>>, %arg5: memref<1x1x16x16xf32, #tpu.memory_space<vmem>>, %arg6: memref<1x1x16x16xf32, #tpu.memory_space<vmem>>, %arg7: memref<1x1x16x16xf32, #tpu.memory_space<vmem>>, %arg8: memref<16x16xf32, #tpu.memory_space<vmem>>, %arg9: memref<16x16xf32, #tpu.memory_space<vmem>>, %arg10: memref<16x16xf32, #tpu.memory_space<vmem>>, %arg11: memref<16x16xf32, #tpu.memory_space<vmem>>, %arg12: memref<16x16xf32, #tpu.memory_space<vmem>>, %arg13: memref<16x16xf32, #tpu.memory_space<vmem>>, %arg14: memref<16x16xf32, #tpu.memory_space<vmem>>, %arg15: memref<1x16x16xf32, #tpu.memory_space<vmem>>, %arg16: memref<1x16x16xf32, #tpu.memory_space<vmem>>, %arg17: memref<1x1x1xf32, #tpu.memory_space<vmem>>) attributes {dimension_semantics = [#tpu.dimension_semantics<parallel>, #tpu.dimension_semantics<arbitrary>], iteration_bounds = array<i64: 2, 4>, scalar_prefetch = 0 : i64, scratch_operands = 0 : i64, tpu.core_type = #tpu.core_type<tc>, window_params = [{transform_indices = @transform_0, window_bounds = array<i64: 1, 16, 16>}, {transform_indices = @transform_1, window_bounds = array<i64: 1, 16, 16>}, {transform_indices = @transform_2, window_bounds = array<i64: 1, 1, 16, 16>}, {transform_indices = @transform_3, window_bounds = array<i64: 1, 1, 16, 16>}, {transform_indices = @transform_4, window_bounds = array<i64: 1, 1, 16, 16>}, {transform_indices = @transform_5, window_bounds = array<i64: 1, 1, 16, 16>}, {pipeline_mode = #tpu.pipeline_mode<synchronous>, transform_indices = @transform_6, window_bounds = array<i64: 16, 16>}, {pipeline_mode = #tpu.pipeline_mode<synchronous>, transform_indices = @transform_7, window_bounds = array<i64: 16, 16>}, {pipeline_mode = #tpu.pipeline_mode<synchronous>, transform_indices = @transform_8, window_bounds = array<i64: 16, 16>}, {pipeline_mode = #tpu.pipeline_mode<synchronous>, transform_indices = @transform_9, window_bounds = array<i64: 16, 16>}, {pipeline_mode = #tpu.pipeline_mode<synchronous>, transform_indices = @transform_10, window_bounds = array<i64: 16, 16>}, {pipeline_mode = #tpu.pipeline_mode<synchronous>, transform_indices = @transform_11, window_bounds = array<i64: 16, 16>}, {pipeline_mode = #tpu.pipeline_mode<synchronous>, transform_indices = @transform_12, window_bounds = array<i64: 16, 16>}, {transform_indices = @transform_13, window_bounds = array<i64: 1, 16, 16>}, {transform_indices = @transform_14, window_bounds = array<i64: 1, 16, 16>}, {transform_indices = @transform_15, window_bounds = array<i64: 1, 1, 1>}]} {
    %c0 = arith.constant 0 : index
    %c0_0 = arith.constant 0 : index
    %c0_1 = arith.constant 0 : index
    %0 = vector.load %arg2[%c0, %c0_0, %c0_1] : memref<1x16x16xf32, #tpu.memory_space<vmem>>, vector<1x16x16xf32>
    %1 = vector.shape_cast %0 : vector<1x16x16xf32> to vector<16x16xf32>
    %c0_2 = arith.constant 0 : index
    %c0_3 = arith.constant 0 : index
    %c0_4 = arith.constant 0 : index
    %2 = vector.load %arg3[%c0_2, %c0_3, %c0_4] : memref<1x16x16xf32, #tpu.memory_space<vmem>>, vector<1x16x16xf32>
    %3 = vector.shape_cast %2 : vector<1x16x16xf32> to vector<16x16xf32>
    %c0_5 = arith.constant 0 : index
    %c0_6 = arith.constant 0 : index
    %c0_7 = arith.constant 0 : index
    %c0_8 = arith.constant 0 : index
    %4 = vector.load %arg4[%c0_5, %c0_6, %c0_7, %c0_8] : memref<1x1x16x16xf32, #tpu.memory_space<vmem>>, vector<1x1x16x16xf32>
    %5 = vector.shape_cast %4 : vector<1x1x16x16xf32> to vector<16x16xf32>
    %c0_9 = arith.constant 0 : index
    %c0_10 = arith.constant 0 : index
    %c0_11 = arith.constant 0 : index
    %c0_12 = arith.constant 0 : index
    %6 = vector.load %arg5[%c0_9, %c0_10, %c0_11, %c0_12] : memref<1x1x16x16xf32, #tpu.memory_space<vmem>>, vector<1x1x16x16xf32>
    %7 = vector.shape_cast %6 : vector<1x1x16x16xf32> to vector<16x16xf32>
    %c0_13 = arith.constant 0 : index
    %c0_14 = arith.constant 0 : index
    %8 = vector.load %arg8[%c0_13, %c0_14] : memref<16x16xf32, #tpu.memory_space<vmem>>, vector<16x16xf32>
    %9 = arith.mulf %1, %5 : vector<16x16xf32>
    %10 = arith.mulf %3, %7 : vector<16x16xf32>
    %11 = arith.subf %9, %10 : vector<16x16xf32>
    %12 = arith.mulf %1, %7 : vector<16x16xf32>
    %13 = arith.mulf %3, %5 : vector<16x16xf32>
    %14 = arith.addf %12, %13 : vector<16x16xf32>
    %c0_15 = arith.constant 0 : index
    %c0_16 = arith.constant 0 : index
    %15 = vector.load %arg9[%c0_15, %c0_16] : memref<16x16xf32, #tpu.memory_space<vmem>>, vector<16x16xf32>
    %c0_17 = arith.constant 0 : index
    %c0_18 = arith.constant 0 : index
    %16 = vector.load %arg10[%c0_17, %c0_18] : memref<16x16xf32, #tpu.memory_space<vmem>>, vector<16x16xf32>
    %c0_19 = arith.constant 0 : index
    %c0_20 = arith.constant 0 : index
    %17 = vector.load %arg11[%c0_19, %c0_20] : memref<16x16xf32, #tpu.memory_space<vmem>>, vector<16x16xf32>
    %18 = arith.addf %11, %14 : vector<16x16xf32>
    %cst = arith.constant dense<0.000000e+00> : vector<16x16xf32>
    %19 = tpu.matmul %15, %18, %cst {dimension_numbers = #tpu.dot_dimension_numbers<[1], [0], [0], [1], [0, 0, 1, 1], [], []>} : vector<16x16xf32>, vector<16x16xf32>, vector<16x16xf32> -> vector<16x16xf32>
    %cst_21 = arith.constant dense<0.000000e+00> : vector<16x16xf32>
    %20 = tpu.matmul %16, %14, %cst_21 {dimension_numbers = #tpu.dot_dimension_numbers<[1], [0], [0], [1], [0, 0, 1, 1], [], []>} : vector<16x16xf32>, vector<16x16xf32>, vector<16x16xf32> -> vector<16x16xf32>
    %cst_22 = arith.constant dense<0.000000e+00> : vector<16x16xf32>
    %21 = tpu.matmul %17, %11, %cst_22 {dimension_numbers = #tpu.dot_dimension_numbers<[1], [0], [0], [1], [0, 0, 1, 1], [], []>} : vector<16x16xf32>, vector<16x16xf32>, vector<16x16xf32> -> vector<16x16xf32>
    %22 = arith.subf %19, %20 : vector<16x16xf32>
    %23 = arith.addf %19, %21 : vector<16x16xf32>
    %c0_23 = arith.constant 0 : index
    %c0_24 = arith.constant 0 : index
    %24 = vector.load %arg12[%c0_23, %c0_24] : memref<16x16xf32, #tpu.memory_space<vmem>>, vector<16x16xf32>
    %c0_25 = arith.constant 0 : index
    %c0_26 = arith.constant 0 : index
    %25 = vector.load %arg13[%c0_25, %c0_26] : memref<16x16xf32, #tpu.memory_space<vmem>>, vector<16x16xf32>
    %c0_27 = arith.constant 0 : index
    %c0_28 = arith.constant 0 : index
    %26 = vector.load %arg14[%c0_27, %c0_28] : memref<16x16xf32, #tpu.memory_space<vmem>>, vector<16x16xf32>
    %27 = arith.addf %22, %23 : vector<16x16xf32>
    %cst_29 = arith.constant dense<0.000000e+00> : vector<16x16xf32>
    %28 = tpu.matmul %27, %24, %cst_29 {dimension_numbers = #tpu.dot_dimension_numbers<[1], [0], [0], [1], [0, 0, 1, 1], [], []>} : vector<16x16xf32>, vector<16x16xf32>, vector<16x16xf32> -> vector<16x16xf32>
    %cst_30 = arith.constant dense<0.000000e+00> : vector<16x16xf32>
    %29 = tpu.matmul %23, %25, %cst_30 {dimension_numbers = #tpu.dot_dimension_numbers<[1], [0], [0], [1], [0, 0, 1, 1], [], []>} : vector<16x16xf32>, vector<16x16xf32>, vector<16x16xf32> -> vector<16x16xf32>
    %cst_31 = arith.constant dense<0.000000e+00> : vector<16x16xf32>
    %30 = tpu.matmul %22, %26, %cst_31 {dimension_numbers = #tpu.dot_dimension_numbers<[1], [0], [0], [1], [0, 0, 1, 1], [], []>} : vector<16x16xf32>, vector<16x16xf32>, vector<16x16xf32> -> vector<16x16xf32>
    %31 = arith.subf %28, %29 : vector<16x16xf32>
    %32 = arith.addf %28, %30 : vector<16x16xf32>
    %33 = arith.mulf %31, %8 : vector<16x16xf32>
    %c0_32 = arith.constant 0 : index
    %c0_33 = arith.constant 0 : index
    %c0_34 = arith.constant 0 : index
    %c0_35 = arith.constant 0 : index
    %34 = vector.load %arg6[%c0_32, %c0_33, %c0_34, %c0_35] : memref<1x1x16x16xf32, #tpu.memory_space<vmem>>, vector<1x1x16x16xf32>
    %35 = vector.shape_cast %34 : vector<1x1x16x16xf32> to vector<16x16xf32>
    %36 = arith.subf %33, %35 : vector<16x16xf32>
    %37 = arith.mulf %32, %8 : vector<16x16xf32>
    %c0_36 = arith.constant 0 : index
    %c0_37 = arith.constant 0 : index
    %c0_38 = arith.constant 0 : index
    %c0_39 = arith.constant 0 : index
    %38 = vector.load %arg7[%c0_36, %c0_37, %c0_38, %c0_39] : memref<1x1x16x16xf32, #tpu.memory_space<vmem>>, vector<1x1x16x16xf32>
    %39 = vector.shape_cast %38 : vector<1x1x16x16xf32> to vector<16x16xf32>
    %40 = arith.subf %37, %39 : vector<16x16xf32>
    %41 = arith.mulf %36, %36 : vector<16x16xf32>
    %42 = arith.mulf %40, %40 : vector<16x16xf32>
    %43 = arith.addf %41, %42 : vector<16x16xf32>
    %cst_40 = arith.constant dense<0.000000e+00> : vector<16xf32>
    %44 = vector.multi_reduction <add>, %43, %cst_40 [1] : vector<16x16xf32> to vector<16xf32>
    %45 = vector.shape_cast %44 : vector<16xf32> to vector<16x1xf32>
    %cst_41 = arith.constant dense<0.000000e+00> : vector<1xf32>
    %46 = vector.multi_reduction <add>, %45, %cst_41 [0] : vector<16x1xf32> to vector<1xf32>
    %47 = vector.shape_cast %46 : vector<1xf32> to vector<1x1xf32>
    %48 = arith.mulf %36, %8 : vector<16x16xf32>
    %49 = arith.mulf %40, %8 : vector<16x16xf32>
    %c0_42 = arith.constant 0 : index
    %c0_43 = arith.constant 0 : index
    %50 = vector.load %arg9[%c0_42, %c0_43] : memref<16x16xf32, #tpu.memory_space<vmem>>, vector<16x16xf32>
    %c0_44 = arith.constant 0 : index
    %c0_45 = arith.constant 0 : index
    %51 = vector.load %arg10[%c0_44, %c0_45] : memref<16x16xf32, #tpu.memory_space<vmem>>, vector<16x16xf32>
    %c0_46 = arith.constant 0 : index
    %c0_47 = arith.constant 0 : index
    %52 = vector.load %arg11[%c0_46, %c0_47] : memref<16x16xf32, #tpu.memory_space<vmem>>, vector<16x16xf32>
    %53 = arith.addf %48, %49 : vector<16x16xf32>
    %cst_48 = arith.constant dense<0.000000e+00> : vector<16x16xf32>
    %54 = tpu.matmul %50, %53, %cst_48 {dimension_numbers = #tpu.dot_dimension_numbers<[1], [0], [0], [1], [0, 0, 1, 1], [], []>} : vector<16x16xf32>, vector<16x16xf32>, vector<16x16xf32> -> vector<16x16xf32>
    %cst_49 = arith.constant dense<0.000000e+00> : vector<16x16xf32>
    %55 = tpu.matmul %52, %49, %cst_49 {dimension_numbers = #tpu.dot_dimension_numbers<[1], [0], [0], [1], [0, 0, 1, 1], [], []>} : vector<16x16xf32>, vector<16x16xf32>, vector<16x16xf32> -> vector<16x16xf32>
    %cst_50 = arith.constant dense<0.000000e+00> : vector<16x16xf32>
    %56 = tpu.matmul %51, %48, %cst_50 {dimension_numbers = #tpu.dot_dimension_numbers<[1], [0], [0], [1], [0, 0, 1, 1], [], []>} : vector<16x16xf32>, vector<16x16xf32>, vector<16x16xf32> -> vector<16x16xf32>
    %57 = arith.addf %54, %55 : vector<16x16xf32>
    %58 = arith.subf %54, %56 : vector<16x16xf32>
    %c0_51 = arith.constant 0 : index
    %c0_52 = arith.constant 0 : index
    %59 = vector.load %arg12[%c0_51, %c0_52] : memref<16x16xf32, #tpu.memory_space<vmem>>, vector<16x16xf32>
    %c0_53 = arith.constant 0 : index
    %c0_54 = arith.constant 0 : index
    %60 = vector.load %arg13[%c0_53, %c0_54] : memref<16x16xf32, #tpu.memory_space<vmem>>, vector<16x16xf32>
    %c0_55 = arith.constant 0 : index
    %c0_56 = arith.constant 0 : index
    %61 = vector.load %arg14[%c0_55, %c0_56] : memref<16x16xf32, #tpu.memory_space<vmem>>, vector<16x16xf32>
    %62 = arith.addf %57, %58 : vector<16x16xf32>
    %cst_57 = arith.constant dense<0.000000e+00> : vector<16x16xf32>
    %63 = tpu.matmul %62, %59, %cst_57 {dimension_numbers = #tpu.dot_dimension_numbers<[1], [0], [0], [1], [0, 0, 1, 1], [], []>} : vector<16x16xf32>, vector<16x16xf32>, vector<16x16xf32> -> vector<16x16xf32>
    %cst_58 = arith.constant dense<0.000000e+00> : vector<16x16xf32>
    %64 = tpu.matmul %58, %61, %cst_58 {dimension_numbers = #tpu.dot_dimension_numbers<[1], [0], [0], [1], [0, 0, 1, 1], [], []>} : vector<16x16xf32>, vector<16x16xf32>, vector<16x16xf32> -> vector<16x16xf32>
    %cst_59 = arith.constant dense<0.000000e+00> : vector<16x16xf32>
    %65 = tpu.matmul %57, %60, %cst_59 {dimension_numbers = #tpu.dot_dimension_numbers<[1], [0], [0], [1], [0, 0, 1, 1], [], []>} : vector<16x16xf32>, vector<16x16xf32>, vector<16x16xf32> -> vector<16x16xf32>
    %66 = arith.addf %63, %64 : vector<16x16xf32>
    %67 = arith.subf %63, %65 : vector<16x16xf32>
    %68 = arith.mulf %5, %66 : vector<16x16xf32>
    %69 = arith.mulf %7, %67 : vector<16x16xf32>
    %70 = arith.addf %68, %69 : vector<16x16xf32>
    %71 = arith.mulf %5, %67 : vector<16x16xf32>
    %72 = arith.mulf %7, %66 : vector<16x16xf32>
    %73 = arith.subf %71, %72 : vector<16x16xf32>
    %c0_i32 = arith.constant 0 : i32
    %74 = arith.cmpi eq, %arg1, %c0_i32 : i32
    %75 = arith.extui %74 : i1 to i32
    %c0_i32_60 = arith.constant 0 : i32
    %76 = arith.cmpi ne, %75, %c0_i32_60 : i32
    scf.if %76 {
      %c0_63 = arith.constant 0 : index
      %c0_64 = arith.constant 0 : index
      %c0_65 = arith.constant 0 : index
      %80 = vector.load %arg15[%c0_63, %c0_64, %c0_65] : memref<1x16x16xf32, #tpu.memory_space<vmem>>, vector<1x16x16xf32>
      %81 = vector.shape_cast %80 : vector<1x16x16xf32> to vector<16x16xf32>
      %82 = vector.shape_cast %70 : vector<16x16xf32> to vector<1x16x16xf32>
      tpu.vector_store %arg15[%c0_63, %c0_64, %c0_65], %82 {strides = array<i32>} : memref<1x16x16xf32, #tpu.memory_space<vmem>>, vector<1x16x16xf32>,
      %c0_66 = arith.constant 0 : index
      %c0_67 = arith.constant 0 : index
      %c0_68 = arith.constant 0 : index
      %83 = vector.load %arg16[%c0_66, %c0_67, %c0_68] : memref<1x16x16xf32, #tpu.memory_space<vmem>>, vector<1x16x16xf32>
      %84 = vector.shape_cast %83 : vector<1x16x16xf32> to vector<16x16xf32>
      %85 = vector.shape_cast %73 : vector<16x16xf32> to vector<1x16x16xf32>
      tpu.vector_store %arg16[%c0_66, %c0_67, %c0_68], %85 {strides = array<i32>} : memref<1x16x16xf32, #tpu.memory_space<vmem>>, vector<1x16x16xf32>,
      %c0_69 = arith.constant 0 : index
      %c0_70 = arith.constant 0 : index
      %c0_71 = arith.constant 0 : index
      %86 = vector.load %arg17[%c0_69, %c0_70, %c0_71] : memref<1x1x1xf32, #tpu.memory_space<vmem>>, vector<1x1x1xf32>
      %87 = vector.shape_cast %86 : vector<1x1x1xf32> to vector<1x1xf32>
      %88 = vector.shape_cast %47 : vector<1x1xf32> to vector<1x1x1xf32>
      tpu.vector_store %arg17[%c0_69, %c0_70, %c0_71], %88 {strides = array<i32>} : memref<1x1x1xf32, #tpu.memory_space<vmem>>, vector<1x1x1xf32>,
    } else {
    }
    %c0_i32_61 = arith.constant 0 : i32
    %77 = arith.cmpi sgt, %arg1, %c0_i32_61 : i32
    %78 = arith.extui %77 : i1 to i32
    %c0_i32_62 = arith.constant 0 : i32
    %79 = arith.cmpi ne, %78, %c0_i32_62 : i32
    scf.if %79 {
      %c0_63 = arith.constant 0 : index
      %c0_64 = arith.constant 0 : index
      %c0_65 = arith.constant 0 : index
      %80 = vector.load %arg15[%c0_63, %c0_64, %c0_65] : memref<1x16x16xf32, #tpu.memory_space<vmem>>, vector<1x16x16xf32>
      %81 = vector.shape_cast %80 : vector<1x16x16xf32> to vector<16x16xf32>
      %82 = arith.addf %81, %70 : vector<16x16xf32>
      %c0_66 = arith.constant 0 : index
      %c0_67 = arith.constant 0 : index
      %c0_68 = arith.constant 0 : index
      %83 = vector.load %arg15[%c0_66, %c0_67, %c0_68] : memref<1x16x16xf32, #tpu.memory_space<vmem>>, vector<1x16x16xf32>
      %84 = vector.shape_cast %83 : vector<1x16x16xf32> to vector<16x16xf32>
      %85 = vector.shape_cast %82 : vector<16x16xf32> to vector<1x16x16xf32>
      tpu.vector_store %arg15[%c0_66, %c0_67, %c0_68], %85 {strides = array<i32>} : memref<1x16x16xf32, #tpu.memory_space<vmem>>, vector<1x16x16xf32>,
      %c0_69 = arith.constant 0 : index
      %c0_70 = arith.constant 0 : index
      %c0_71 = arith.constant 0 : index
      %86 = vector.load %arg16[%c0_69, %c0_70, %c0_71] : memref<1x16x16xf32, #tpu.memory_space<vmem>>, vector<1x16x16xf32>
      %87 = vector.shape_cast %86 : vector<1x16x16xf32> to vector<16x16xf32>
      %88 = arith.addf %87, %73 : vector<16x16xf32>
      %c0_72 = arith.constant 0 : index
      %c0_73 = arith.constant 0 : index
      %c0_74 = arith.constant 0 : index
      %89 = vector.load %arg16[%c0_72, %c0_73, %c0_74] : memref<1x16x16xf32, #tpu.memory_space<vmem>>, vector<1x16x16xf32>
      %90 = vector.shape_cast %89 : vector<1x16x16xf32> to vector<16x16xf32>
      %91 = vector.shape_cast %88 : vector<16x16xf32> to vector<1x16x16xf32>
      tpu.vector_store %arg16[%c0_72, %c0_73, %c0_74], %91 {strides = array<i32>} : memref<1x16x16xf32, #tpu.memory_space<vmem>>, vector<1x16x16xf32>,
      %c0_75 = arith.constant 0 : index
      %c0_76 = arith.constant 0 : index
      %c0_77 = arith.constant 0 : index
      %92 = vector.load %arg17[%c0_75, %c0_76, %c0_77] : memref<1x1x1xf32, #tpu.memory_space<vmem>>, vector<1x1x1xf32>
      %93 = vector.shape_cast %92 : vector<1x1x1xf32> to vector<1x1xf32>
      %94 = arith.addf %93, %47 : vector<1x1xf32>
      %c0_78 = arith.constant 0 : index
      %c0_79 = arith.constant 0 : index
      %c0_80 = arith.constant 0 : index
      %95 = vector.load %arg17[%c0_78, %c0_79, %c0_80] : memref<1x1x1xf32, #tpu.memory_space<vmem>>, vector<1x1x1xf32>
      %96 = vector.shape_cast %95 : vector<1x1x1xf32> to vector<1x1xf32>
      %97 = vector.shape_cast %94 : vector<1x1xf32> to vector<1x1x1xf32>
      tpu.vector_store %arg17[%c0_78, %c0_79, %c0_80], %97 {strides = array<i32>} : memref<1x1x1xf32, #tpu.memory_space<vmem>>, vector<1x1x1xf32>,
    } else {
    }
    return
  }
  func.func @transform_0(%arg0: i32, %arg1: i32) -> (i32, i32, i32) {
    %c0_i32 = arith.constant 0 : i32
    %c0_i32_0 = arith.constant 0 : i32
    %c0_i32_1 = arith.constant 0 : i32
    return %arg0, %c0_i32, %c0_i32_0 : i32, i32, i32
  }
  func.func @transform_1(%arg0: i32, %arg1: i32) -> (i32, i32, i32) {
    %c0_i32 = arith.constant 0 : i32
    %c0_i32_0 = arith.constant 0 : i32
    %c0_i32_1 = arith.constant 0 : i32
    return %arg0, %c0_i32, %c0_i32_0 : i32, i32, i32
  }
  func.func @transform_2(%arg0: i32, %arg1: i32) -> (i32, i32, i32, i32) {
    %c0_i32 = arith.constant 0 : i32
    %c0_i32_0 = arith.constant 0 : i32
    %c0_i32_1 = arith.constant 0 : i32
    return %arg0, %arg1, %c0_i32, %c0_i32_0 : i32, i32, i32, i32
  }
  func.func @transform_3(%arg0: i32, %arg1: i32) -> (i32, i32, i32, i32) {
    %c0_i32 = arith.constant 0 : i32
    %c0_i32_0 = arith.constant 0 : i32
    %c0_i32_1 = arith.constant 0 : i32
    return %arg0, %arg1, %c0_i32, %c0_i32_0 : i32, i32, i32, i32
  }
  func.func @transform_4(%arg0: i32, %arg1: i32) -> (i32, i32, i32, i32) {
    %c0_i32 = arith.constant 0 : i32
    %c0_i32_0 = arith.constant 0 : i32
    %c0_i32_1 = arith.constant 0 : i32
    return %arg0, %arg1, %c0_i32, %c0_i32_0 : i32, i32, i32, i32
  }
  func.func @transform_5(%arg0: i32, %arg1: i32) -> (i32, i32, i32, i32) {
    %c0_i32 = arith.constant 0 : i32
    %c0_i32_0 = arith.constant 0 : i32
    %c0_i32_1 = arith.constant 0 : i32
    return %arg0, %arg1, %c0_i32, %c0_i32_0 : i32, i32, i32, i32
  }
  func.func @transform_6(%arg0: i32, %arg1: i32) -> (i32, i32) {
    %c0_i32 = arith.constant 0 : i32
    %c0_i32_0 = arith.constant 0 : i32
    %c0_i32_1 = arith.constant 0 : i32
    return %c0_i32, %c0_i32_0 : i32, i32
  }
  func.func @transform_7(%arg0: i32, %arg1: i32) -> (i32, i32) {
    %c0_i32 = arith.constant 0 : i32
    %c0_i32_0 = arith.constant 0 : i32
    %c0_i32_1 = arith.constant 0 : i32
    return %c0_i32, %c0_i32_0 : i32, i32
  }
  func.func @transform_8(%arg0: i32, %arg1: i32) -> (i32, i32) {
    %c0_i32 = arith.constant 0 : i32
    %c0_i32_0 = arith.constant 0 : i32
    %c0_i32_1 = arith.constant 0 : i32
    return %c0_i32, %c0_i32_0 : i32, i32
  }
  func.func @transform_9(%arg0: i32, %arg1: i32) -> (i32, i32) {
    %c0_i32 = arith.constant 0 : i32
    %c0_i32_0 = arith.constant 0 : i32
    %c0_i32_1 = arith.constant 0 : i32
    return %c0_i32, %c0_i32_0 : i32, i32
  }
  func.func @transform_10(%arg0: i32, %arg1: i32) -> (i32, i32) {
    %c0_i32 = arith.constant 0 : i32
    %c0_i32_0 = arith.constant 0 : i32
    %c0_i32_1 = arith.constant 0 : i32
    return %c0_i32, %c0_i32_0 : i32, i32
  }
  func.func @transform_11(%arg0: i32, %arg1: i32) -> (i32, i32) {
    %c0_i32 = arith.constant 0 : i32
    %c0_i32_0 = arith.constant 0 : i32
    %c0_i32_1 = arith.constant 0 : i32
    return %c0_i32, %c0_i32_0 : i32, i32
  }
  func.func @transform_12(%arg0: i32, %arg1: i32) -> (i32, i32) {
    %c0_i32 = arith.constant 0 : i32
    %c0_i32_0 = arith.constant 0 : i32
    %c0_i32_1 = arith.constant 0 : i32
    return %c0_i32, %c0_i32_0 : i32, i32
  }
  func.func @transform_13(%arg0: i32, %arg1: i32) -> (i32, i32, i32) {
    %c0_i32 = arith.constant 0 : i32
    %c0_i32_0 = arith.constant 0 : i32
    %c0_i32_1 = arith.constant 0 : i32
    return %arg0, %c0_i32, %c0_i32_0 : i32, i32, i32
  }
  func.func @transform_14(%arg0: i32, %arg1: i32) -> (i32, i32, i32) {
    %c0_i32 = arith.constant 0 : i32
    %c0_i32_0 = arith.constant 0 : i32
    %c0_i32_1 = arith.constant 0 : i32
    return %arg0, %c0_i32, %c0_i32_0 : i32, i32, i32
  }
  func.func @transform_15(%arg0: i32, %arg1: i32) -> (i32, i32, i32) {
    %c0_i32 = arith.constant 0 : i32
    %c0_i32_0 = arith.constant 0 : i32
    %c0_i32_1 = arith.constant 0 : i32
    return %arg0, %c0_i32, %c0_i32_0 : i32, i32, i32
  }
}

</mosaic_0001>

<llo_original>
// kernel: custom-call
$region0: #{custom-call}
  %s0 = inlined_call_operand.hbm [shape: c64[2,16,16], index: 0, kind: input, shape index: {}]
  %s1 = inlined_call_operand.vmem [shape: f32[2,16,16], index: 1, kind: output, shape index: {}]
  $region1: #{custom-call} parent=0
    #allocation0 [shape = 's32[1]{0}', space=sflag, size = 0x4, scoped, tag = 'scoped memory for custom-call']
    %2 = vsyncpa [#allocation0], 0
    %s4 = sshll.u32 %s0, 4
    %s5 = int_to_ptr.hbm [resolvable:$true] %s4
    %s6 = sshll.u32 %s1, 4
    %s7 = int_to_ptr.vmem [resolvable:$true] %s6
    %9 = dma.hbm_to_vmem [thread:$0]  %s5, 512, %s7, [#allocation0]
    %11 = dma.done [#allocation0], 512
    %12 = vsyncpa [#allocation0], 1

// kernel: custom-call.2
$region0: #{custom-call.2}
  %s0 = inlined_call_operand.vmem [shape: c64[2,16,16,4], index: 0, kind: input, shape index: {}]
  %s1 = inlined_call_operand.vmem [shape: f32[2,16,16,4], index: 1, kind: output, shape index: {}]
  %v2 = vld [vmem:[%s0] sm:$0xff]
  %3 = vst [vmem:[%s1] sm:$0xff] %v2
  %s4 = scalar_lea.vmem %s1, 8
  %s5 = scalar_lea.vmem %s0, 8
  %v6 = vld [vmem:[%s5] sm:$0xff]
  %7 = vst [vmem:[%s4] sm:$0xff] %v6
  %s8 = scalar_lea.vmem %s1, 16
  %s9 = scalar_lea.vmem %s0, 16
  %v10 = vld [vmem:[%s9] sm:$0xff]
  %11 = vst [vmem:[%s8] sm:$0xff] %v10
  %s12 = scalar_lea.vmem %s1, 24
  %s13 = scalar_lea.vmem %s0, 24
  %v14 = vld [vmem:[%s13] sm:$0xff]
  %15 = vst [vmem:[%s12] sm:$0xff] %v14
  %s16 = scalar_lea.vmem %s1, 32
  %s17 = scalar_lea.vmem %s0, 32
  %v18 = vld [vmem:[%s17] sm:$0xff]
  %19 = vst [vmem:[%s16] sm:$0xff] %v18
  %s20 = scalar_lea.vmem %s1, 40
  %s21 = scalar_lea.vmem %s0, 40
  %v22 = vld [vmem:[%s21] sm:$0xff]
  %23 = vst [vmem:[%s20] sm:$0xff] %v22
  %s24 = scalar_lea.vmem %s1, 48
  %s25 = scalar_lea.vmem %s0, 48
  %v26 = vld [vmem:[%s25] sm:$0xff]
  %27 = vst [vmem:[%s24] sm:$0xff] %v26
  %s28 = scalar_lea.vmem %s1, 56
  %s29 = scalar_lea.vmem %s0, 56
  %v30 = vld [vmem:[%s29] sm:$0xff]
  %31 = vst [vmem:[%s28] sm:$0xff] %v30
  %s32 = scalar_lea.vmem %s1, 64
  %s33 = scalar_lea.vmem %s0, 64
  %v34 = vld [vmem:[%s33] sm:$0xff]
  %35 = vst [vmem:[%s32] sm:$0xff] %v34
  %s36 = scalar_lea.vmem %s1, 72
  %s37 = scalar_lea.vmem %s0, 72
  %v38 = vld [vmem:[%s37] sm:$0xff]
  %39 = vst [vmem:[%s36] sm:$0xff] %v38
  %s40 = scalar_lea.vmem %s1, 80
  %s41 = scalar_lea.vmem %s0, 80
  %v42 = vld [vmem:[%s41] sm:$0xff]
  %43 = vst [vmem:[%s40] sm:$0xff] %v42
  %s44 = scalar_lea.vmem %s1, 88
  %s45 = scalar_lea.vmem %s0, 88
  %v46 = vld [vmem:[%s45] sm:$0xff]
  %47 = vst [vmem:[%s44] sm:$0xff] %v46
  %s48 = scalar_lea.vmem %s1, 96
  %s49 = scalar_lea.vmem %s0, 96
  %v50 = vld [vmem:[%s49] sm:$0xff]
  %51 = vst [vmem:[%s48] sm:$0xff] %v50
  %s52 = scalar_lea.vmem %s1, 104
  %s53 = scalar_lea.vmem %s0, 104
  %v54 = vld [vmem:[%s53] sm:$0xff]
  %55 = vst [vmem:[%s52] sm:$0xff] %v54
  %s56 = scalar_lea.vmem %s1, 112
  %s57 = scalar_lea.vmem %s0, 112
  %v58 = vld [vmem:[%s57] sm:$0xff]
  %59 = vst [vmem:[%s56] sm:$0xff] %v58
  %s60 = scalar_lea.vmem %s1, 120
  %s61 = scalar_lea.vmem %s0, 120
  %v62 = vld [vmem:[%s61] sm:$0xff]
  %63 = vst [vmem:[%s60] sm:$0xff] %v62

// kernel: custom-call.1
$region0: #{custom-call.1}
  %s0 = inlined_call_operand.hbm [shape: c64[2,16,16], index: 0, kind: input, shape index: {}]
  %s1 = inlined_call_operand.vmem [shape: f32[2,16,16], index: 1, kind: output, shape index: {}]
  %s2 = scalar_lea.hbm %s0, 32
  $region1: #{custom-call.1} parent=0
    #allocation0 [shape = 's32[1]{0}', space=sflag, size = 0x4, scoped, tag = 'scoped memory for custom-call.1']
    %3 = vsyncpa [#allocation0], 0
    %s5 = sshll.u32 %s2, 4
    %s6 = int_to_ptr.hbm [resolvable:$true] %s5
    %s7 = sshll.u32 %s1, 4
    %s8 = int_to_ptr.vmem [resolvable:$true] %s7
    %10 = dma.hbm_to_vmem [thread:$0]  %s6, 512, %s8, [#allocation0]
    %12 = dma.done [#allocation0], 512
    %13 = vsyncpa [#allocation0], 1

// kernel: custom-call.3
$region0: #{custom-call.3}
  %s0 = inlined_call_operand.vmem [shape: c64[2,16,16,4], index: 0, kind: input, shape index: {}]
  %s1 = inlined_call_operand.vmem [shape: f32[2,16,16,4], index: 1, kind: output, shape index: {}]
  %s2 = scalar_lea.vmem %s0, 128
  %v3 = vld [vmem:[%s2] sm:$0xff]
  %4 = vst [vmem:[%s1] sm:$0xff] %v3
  %s5 = scalar_lea.vmem %s1, 8
  %s6 = scalar_lea.vmem %s2, 8
  %v7 = vld [vmem:[%s6] sm:$0xff]
  %8 = vst [vmem:[%s5] sm:$0xff] %v7
  %s9 = scalar_lea.vmem %s1, 16
  %s10 = scalar_lea.vmem %s2, 16
  %v11 = vld [vmem:[%s10] sm:$0xff]
  %12 = vst [vmem:[%s9] sm:$0xff] %v11
  %s13 = scalar_lea.vmem %s1, 24
  %s14 = scalar_lea.vmem %s2, 24
  %v15 = vld [vmem:[%s14] sm:$0xff]
  %16 = vst [vmem:[%s13] sm:$0xff] %v15
  %s17 = scalar_lea.vmem %s1, 32
  %s18 = scalar_lea.vmem %s2, 32
  %v19 = vld [vmem:[%s18] sm:$0xff]
  %20 = vst [vmem:[%s17] sm:$0xff] %v19
  %s21 = scalar_lea.vmem %s1, 40
  %s22 = scalar_lea.vmem %s2, 40
  %v23 = vld [vmem:[%s22] sm:$0xff]
  %24 = vst [vmem:[%s21] sm:$0xff] %v23
  %s25 = scalar_lea.vmem %s1, 48
  %s26 = scalar_lea.vmem %s2, 48
  %v27 = vld [vmem:[%s26] sm:$0xff]
  %28 = vst [vmem:[%s25] sm:$0xff] %v27
  %s29 = scalar_lea.vmem %s1, 56
  %s30 = scalar_lea.vmem %s2, 56
  %v31 = vld [vmem:[%s30] sm:$0xff]
  %32 = vst [vmem:[%s29] sm:$0xff] %v31
  %s33 = scalar_lea.vmem %s1, 64
  %s34 = scalar_lea.vmem %s2, 64
  %v35 = vld [vmem:[%s34] sm:$0xff]
  %36 = vst [vmem:[%s33] sm:$0xff] %v35
  %s37 = scalar_lea.vmem %s1, 72
  %s38 = scalar_lea.vmem %s2, 72
  %v39 = vld [vmem:[%s38] sm:$0xff]
  %40 = vst [vmem:[%s37] sm:$0xff] %v39
  %s41 = scalar_lea.vmem %s1, 80
  %s42 = scalar_lea.vmem %s2, 80
  %v43 = vld [vmem:[%s42] sm:$0xff]
  %44 = vst [vmem:[%s41] sm:$0xff] %v43
  %s45 = scalar_lea.vmem %s1, 88
  %s46 = scalar_lea.vmem %s2, 88
  %v47 = vld [vmem:[%s46] sm:$0xff]
  %48 = vst [vmem:[%s45] sm:$0xff] %v47
  %s49 = scalar_lea.vmem %s1, 96
  %s50 = scalar_lea.vmem %s2, 96
  %v51 = vld [vmem:[%s50] sm:$0xff]
  %52 = vst [vmem:[%s49] sm:$0xff] %v51
  %s53 = scalar_lea.vmem %s1, 104
  %s54 = scalar_lea.vmem %s2, 104
  %v55 = vld [vmem:[%s54] sm:$0xff]
  %56 = vst [vmem:[%s53] sm:$0xff] %v55
  %s57 = scalar_lea.vmem %s1, 112
  %s58 = scalar_lea.vmem %s2, 112
  %v59 = vld [vmem:[%s58] sm:$0xff]
  %60 = vst [vmem:[%s57] sm:$0xff] %v59
  %s61 = scalar_lea.vmem %s1, 120
  %s62 = scalar_lea.vmem %s2, 120
  %v63 = vld [vmem:[%s62] sm:$0xff]
  %64 = vst [vmem:[%s61] sm:$0xff] %v63

// kernel: custom-call.6
$region0: #{custom-call.6}
  %s0 = inlined_call_operand.vmem [shape: f32[2,16,16], index: 0, kind: input, shape index: {}]
  %s1 = inlined_call_operand.vmem [shape: f32[2,16,16], index: 1, kind: input, shape index: {}]
  %s2 = inlined_call_operand.hbm [shape: c64[2,16,16], index: 2, kind: output, shape index: {}]
  %s3 = scalar_lea.hbm %s2, 32
  $region1: #{custom-call.6} parent=0
    #allocation0 [shape = 's32[1]{0}', space=sflag, size = 0x4, scoped, tag = 'scoped memory for custom-call.6']
    %4 = vsyncpa [#allocation0], 0
    %s6 = sshll.u32 %s0, 4
    %s7 = int_to_ptr.vmem [resolvable:$true] %s6
    %s8 = sshll.u32 %s2, 4
    %s9 = int_to_ptr.hbm [resolvable:$true] %s8
    %11 = dma.vmem_to_hbm [thread:$0]  %s7, 512, %s9, [#allocation0]
    %13 = dma.done [#allocation0], 512
    %14 = vsyncpa [#allocation0], 1
  $region2: #{custom-call.6} parent=0
    #allocation1 [shape = 's32[1]{0}', space=sflag, size = 0x4, scoped, tag = 'scoped memory for custom-call.6']
    %15 = vsyncpa [#allocation1], 0
    %s17 = sshll.u32 %s1, 4
    %s18 = int_to_ptr.vmem [resolvable:$true] %s17
    %s19 = sshll.u32 %s3, 4
    %s20 = int_to_ptr.hbm [resolvable:$true] %s19
    %22 = dma.vmem_to_hbm [thread:$0]  %s18, 512, %s20, [#allocation1]
    %24 = dma.done [#allocation1], 512
    %25 = vsyncpa [#allocation1], 1

// kernel: grad_desc_forward.3
$region0: #{grad_desc_forward.3}
  #allocation0 [shape = 'u32[]', space=smem, size = 0x4, offset = 0x4, fixed_abs, tag = 'smem constant byte address 0x4 - core index']
  #allocation1 [shape = 'u32[72,128]{1,0:T(1,128)}', space=vmem, size = 0x9000, scoped, tag = 'internal scratch']
  %s0 = inlined_call_operand.vmem [shape: f32[2,16,16], index: 0, kind: input, shape index: {}]
  %s1 = inlined_call_operand.vmem [shape: f32[2,16,16], index: 1, kind: input, shape index: {}]
  %s2 = inlined_call_operand.vmem [shape: f32[2,4,16,16], index: 2, kind: input, shape index: {}]
  %s3 = inlined_call_operand.vmem [shape: f32[2,4,16,16], index: 3, kind: input, shape index: {}]
  %s4 = inlined_call_operand.vmem [shape: f32[16,16], index: 4, kind: input, shape index: {}]
  %s5 = inlined_call_operand.vmem [shape: f32[16,16], index: 5, kind: input, shape index: {}]
  %s6 = inlined_call_operand.vmem [shape: f32[16,16], index: 6, kind: input, shape index: {}]
  %s7 = inlined_call_operand.vmem [shape: f32[16,16], index: 7, kind: input, shape index: {}]
  %s8 = inlined_call_operand.vmem [shape: f32[16,16], index: 8, kind: input, shape index: {}]
  %s9 = inlined_call_operand.vmem [shape: f32[16,16], index: 9, kind: input, shape index: {}]
  %s10 = inlined_call_operand.vmem [shape: f32[16,16], index: 10, kind: input, shape index: {}]
  %s11 = inlined_call_operand.vmem [shape: f32[2,1,1], index: 11, kind: output, shape index: {}]
  %s12 = sld [smem:[#allocation0]]
  $region85: #{grad_desc_forward.3} parent=0
    _
  %s14 = ssub.s32 1, %s12
  %s15 = scalar_select 0, %s14, %s12
  loop: start=0, step=1, limit=10
  $region2: #{grad_desc_forward.3} parent=0 // loop_pre_header
    _
  $region3: #{grad_desc_forward.3} parent=0 // loop_header
    %s17 = sphi 0, %s21
    %p18 = scmp.ge.s32.totalorder %s17, 10
    %s24 = sphi 0, %s36
    %s25 = sphi 0, %s32
    %s26 = sphi 0, %s24
    %s27 = sphi 0, %s25
    %s28 = sphi 0, %s26
    %s29 = sphi 0, %s27
    %s39 = sphi 0, %s41
    %s42 = sphi 0, %s39
    %s43 = sphi 0, %s42
    %s59 = sphi 0, %s43
    %s65 = sphi 0, %s67
    %s68 = sphi 0, %s65
    %s69 = sphi 0, %s68
    %s85 = sphi 0, %s69
    %s93 = sphi 0, %s95
    %s96 = sphi 0, %s93
    %s97 = sphi 0, %s96
    %s113 = sphi 0, %s97
    %s121 = sphi 0, %s123
    %s124 = sphi 0, %s121
    %s125 = sphi 0, %s124
    %s141 = sphi 0, %s125
    %s145 = sphi 0, %s145
    %s147 = sphi 0, %s145
    %s148 = sphi 0, %s147
    %s162 = sphi 0, %s148
    %s166 = sphi 0, %s166
    %s168 = sphi 0, %s166
    %s169 = sphi 0, %s168
    %s183 = sphi 0, %s169
    %s187 = sphi 0, %s187
    %s189 = sphi 0, %s187
    %s190 = sphi 0, %s189
    %s204 = sphi 0, %s190
    %s208 = sphi 0, %s208
    %s210 = sphi 0, %s208
    %s211 = sphi 0, %s210
    %s225 = sphi 0, %s211
    %s229 = sphi 0, %s229
    %s231 = sphi 0, %s229
    %s232 = sphi 0, %s231
    %s246 = sphi 0, %s232
    %s250 = sphi 0, %s250
    %s252 = sphi 0, %s250
    %s253 = sphi 0, %s252
    %s267 = sphi 0, %s253
    %s271 = sphi 0, %s271
    %s273 = sphi 0, %s271
    %s274 = sphi 0, %s273
    %s288 = sphi 0, %s274
    %s294 = sphi 0, %s296
    %s297 = sphi 0, %s294
    %s298 = sphi 0, %s297
    %s314 = sphi 0, %s298
  $region4: #{grad_desc_forward.3} parent=0 // loop_header_branch
    %20 = sbr.rel (%p18) target = $region8
  $region5: #{grad_desc_forward.3} parent=0 // loop_body
    %s22 = ssub.s32 %s17, 1
    %s23 = ssub.s32 %s17, 2
    %s30 = sadd.s32 1, %s25
    %p31 = scmp.ge.s32.totalorder %s30, 4
    %s32 = scalar_select %p31, 0, %s30
    %s33 = sadd.s32 1, %s24
    %s34 = scalar_select %p31, %s33, %s24
    %p35 = scmp.ge.s32.totalorder %s34, 2
    %s36 = scalar_select %p35, 0, %s34
    %s37 = ssub.s32 %s24, %s36
    %p38 = scmp.eq.s32.totalorder %s37, 0
    %s40 = sadd.s32 %s39, 1
    %s41 = scalar_select %p38, %s39, %s40
    %p44 = pneg %p38
    %p45 = scmp.eq.s32.totalorder %s17, 7
    %p46 = por %p44, %p45
    %p47 = scmp.ne.s32.totalorder %s39, %s42
    %p48 = scmp.eq.s32.totalorder %s17, 0
    %p49 = por %p47, %p48
    %p50 = scmp.ne.s32.totalorder %s39, %s42
    %p51 = scmp.eq.s32.totalorder %s22, 7
    %p52 = por %p50, %p51
    %p53 = scmp.ne.s32.totalorder %s42, %s43
    %p54 = scmp.eq.s32.totalorder %s22, 0
    %p55 = por %p53, %p54
    %p56 = scmp.ne.s32.totalorder %s42, %s43
    %p57 = scmp.eq.s32.totalorder %s23, 7
    %p58 = por %p56, %p57
    %p60 = scmp.ne.s32.totalorder %s43, %s59
    %p61 = scmp.eq.s32.totalorder %s23, 0
    %p62 = por %p60, %p61
    %s63 = ssub.s32 %s24, %s36
    %p64 = scmp.eq.s32.totalorder %s63, 0
    %s66 = sadd.s32 %s65, 1
    %s67 = scalar_select %p64, %s65, %s66
    %p70 = pneg %p64
    %p71 = scmp.eq.s32.totalorder %s17, 7
    %p72 = por %p70, %p71
    %p73 = scmp.ne.s32.totalorder %s65, %s68
    %p74 = scmp.eq.s32.totalorder %s17, 0
    %p75 = por %p73, %p74
    %p76 = scmp.ne.s32.totalorder %s65, %s68
    %p77 = scmp.eq.s32.totalorder %s22, 7
    %p78 = por %p76, %p77
    %p79 = scmp.ne.s32.totalorder %s68, %s69
    %p80 = scmp.eq.s32.totalorder %s22, 0
    %p81 = por %p79, %p80
    %p82 = scmp.ne.s32.totalorder %s68, %s69
    %p83 = scmp.eq.s32.totalorder %s23, 7
    %p84 = por %p82, %p83
    %p86 = scmp.ne.s32.totalorder %s69, %s85
    %p87 = scmp.eq.s32.totalorder %s23, 0
    %p88 = por %p86, %p87
    %s89 = ssub.s32 %s24, %s36
    %s90 = ssub.s32 %s25, %s32
    %s91 = sor.u32 %s89, %s90
    %p92 = scmp.eq.s32.totalorder %s91, 0
    %s94 = sadd.s32 %s93, 1
    %s95 = scalar_select %p92, %s93, %s94
    %p98 = pneg %p92
    %p99 = scmp.eq.s32.totalorder %s17, 7
    %p100 = por %p98, %p99
    %p101 = scmp.ne.s32.totalorder %s93, %s96
    %p102 = scmp.eq.s32.totalorder %s17, 0
    %p103 = por %p101, %p102
    %p104 = scmp.ne.s32.totalorder %s93, %s96
    %p105 = scmp.eq.s32.totalorder %s22, 7
    %p106 = por %p104, %p105
    %p107 = scmp.ne.s32.totalorder %s96, %s97
    %p108 = scmp.eq.s32.totalorder %s22, 0
    %p109 = por %p107, %p108
    %p110 = scmp.ne.s32.totalorder %s96, %s97
    %p111 = scmp.eq.s32.totalorder %s23, 7
    %p112 = por %p110, %p111
    %p114 = scmp.ne.s32.totalorder %s97, %s113
    %p115 = scmp.eq.s32.totalorder %s23, 0
    %p116 = por %p114, %p115
    %s117 = ssub.s32 %s24, %s36
    %s118 = ssub.s32 %s25, %s32
    %s119 = sor.u32 %s117, %s118
    %p120 = scmp.eq.s32.totalorder %s119, 0
    %s122 = sadd.s32 %s121, 1
    %s123 = scalar_select %p120, %s121, %s122
    %p126 = pneg %p120
    %p127 = scmp.eq.s32.totalorder %s17, 7
    %p128 = por %p126, %p127
    %p129 = scmp.ne.s32.totalorder %s121, %s124
    %p130 = scmp.eq.s32.totalorder %s17, 0
    %p131 = por %p129, %p130
    %p132 = scmp.ne.s32.totalorder %s121, %s124
    %p133 = scmp.eq.s32.totalorder %s22, 7
    %p134 = por %p132, %p133
    %p135 = scmp.ne.s32.totalorder %s124, %s125
    %p136 = scmp.eq.s32.totalorder %s22, 0
    %p137 = por %p135, %p136
    %p138 = scmp.ne.s32.totalorder %s124, %s125
    %p139 = scmp.eq.s32.totalorder %s23, 7
    %p140 = por %p138, %p139
    %p142 = scmp.ne.s32.totalorder %s125, %s141
    %p143 = scmp.eq.s32.totalorder %s23, 0
    %p144 = por %p142, %p143
    %s146 = sadd.s32 %s145, 1
    %p149 = scmp.eq.s32.totalorder %s17, 7
    %p150 = scmp.ne.s32.totalorder %s145, %s147
    %p151 = scmp.eq.s32.totalorder %s17, 0
    %p152 = por %p150, %p151
    %p153 = scmp.ne.s32.totalorder %s145, %s147
    %p154 = scmp.eq.s32.totalorder %s22, 7
    %p155 = por %p153, %p154
    %p156 = scmp.ne.s32.totalorder %s147, %s148
    %p157 = scmp.eq.s32.totalorder %s22, 0
    %p158 = por %p156, %p157
    %p159 = scmp.ne.s32.totalorder %s147, %s148
    %p160 = scmp.eq.s32.totalorder %s23, 7
    %p161 = por %p159, %p160
    %p163 = scmp.ne.s32.totalorder %s148, %s162
    %p164 = scmp.eq.s32.totalorder %s23, 0
    %p165 = por %p163, %p164
    %s167 = sadd.s32 %s166, 1
    %p170 = scmp.eq.s32.totalorder %s17, 7
    %p171 = scmp.ne.s32.totalorder %s166, %s168
    %p172 = scmp.eq.s32.totalorder %s17, 0
    %p173 = por %p171, %p172
    %p174 = scmp.ne.s32.totalorder %s166, %s168
    %p175 = scmp.eq.s32.totalorder %s22, 7
    %p176 = por %p174, %p175
    %p177 = scmp.ne.s32.totalorder %s168, %s169
    %p178 = scmp.eq.s32.totalorder %s22, 0
    %p179 = por %p177, %p178
    %p180 = scmp.ne.s32.totalorder %s168, %s169
    %p181 = scmp.eq.s32.totalorder %s23, 7
    %p182 = por %p180, %p181
    %p184 = scmp.ne.s32.totalorder %s169, %s183
    %p185 = scmp.eq.s32.totalorder %s23, 0
    %p186 = por %p184, %p185
    %s188 = sadd.s32 %s187, 1
    %p191 = scmp.eq.s32.totalorder %s17, 7
    %p192 = scmp.ne.s32.totalorder %s187, %s189
    %p193 = scmp.eq.s32.totalorder %s17, 0
    %p194 = por %p192, %p193
    %p195 = scmp.ne.s32.totalorder %s187, %s189
    %p196 = scmp.eq.s32.totalorder %s22, 7
    %p197 = por %p195, %p196
    %p198 = scmp.ne.s32.totalorder %s189, %s190
    %p199 = scmp.eq.s32.totalorder %s22, 0
    %p200 = por %p198, %p199
    %p201 = scmp.ne.s32.totalorder %s189, %s190
    %p202 = scmp.eq.s32.totalorder %s23, 7
    %p203 = por %p201, %p202
    %p205 = scmp.ne.s32.totalorder %s190, %s204
    %p206 = scmp.eq.s32.totalorder %s23, 0
    %p207 = por %p205, %p206
    %s209 = sadd.s32 %s208, 1
    %p212 = scmp.eq.s32.totalorder %s17, 7
    %p213 = scmp.ne.s32.totalorder %s208, %s210
    %p214 = scmp.eq.s32.totalorder %s17, 0
    %p215 = por %p213, %p214
    %p216 = scmp.ne.s32.totalorder %s208, %s210
    %p217 = scmp.eq.s32.totalorder %s22, 7
    %p218 = por %p216, %p217
    %p219 = scmp.ne.s32.totalorder %s210, %s211
    %p220 = scmp.eq.s32.totalorder %s22, 0
    %p221 = por %p219, %p220
    %p222 = scmp.ne.s32.totalorder %s210, %s211
    %p223 = scmp.eq.s32.totalorder %s23, 7
    %p224 = por %p222, %p223
    %p226 = scmp.ne.s32.totalorder %s211, %s225
    %p227 = scmp.eq.s32.totalorder %s23, 0
    %p228 = por %p226, %p227
    %s230 = sadd.s32 %s229, 1
    %p233 = scmp.eq.s32.totalorder %s17, 7
    %p234 = scmp.ne.s32.totalorder %s229, %s231
    %p235 = scmp.eq.s32.totalorder %s17, 0
    %p236 = por %p234, %p235
    %p237 = scmp.ne.s32.totalorder %s229, %s231
    %p238 = scmp.eq.s32.totalorder %s22, 7
    %p239 = por %p237, %p238
    %p240 = scmp.ne.s32.totalorder %s231, %s232
    %p241 = scmp.eq.s32.totalorder %s22, 0
    %p242 = por %p240, %p241
    %p243 = scmp.ne.s32.totalorder %s231, %s232
    %p244 = scmp.eq.s32.totalorder %s23, 7
    %p245 = por %p243, %p244
    %p247 = scmp.ne.s32.totalorder %s232, %s246
    %p248 = scmp.eq.s32.totalorder %s23, 0
    %p249 = por %p247, %p248
    %s251 = sadd.s32 %s250, 1
    %p254 = scmp.eq.s32.totalorder %s17, 7
    %p255 = scmp.ne.s32.totalorder %s250, %s252
    %p256 = scmp.eq.s32.totalorder %s17, 0
    %p257 = por %p255, %p256
    %p258 = scmp.ne.s32.totalorder %s250, %s252
    %p259 = scmp.eq.s32.totalorder %s22, 7
    %p260 = por %p258, %p259
    %p261 = scmp.ne.s32.totalorder %s252, %s253
    %p262 = scmp.eq.s32.totalorder %s22, 0
    %p263 = por %p261, %p262
    %p264 = scmp.ne.s32.totalorder %s252, %s253
    %p265 = scmp.eq.s32.totalorder %s23, 7
    %p266 = por %p264, %p265
    %p268 = scmp.ne.s32.totalorder %s253, %s267
    %p269 = scmp.eq.s32.totalorder %s23, 0
    %p270 = por %p268, %p269
    %s272 = sadd.s32 %s271, 1
    %p275 = scmp.eq.s32.totalorder %s17, 7
    %p276 = scmp.ne.s32.totalorder %s271, %s273
    %p277 = scmp.eq.s32.totalorder %s17, 0
    %p278 = por %p276, %p277
    %p279 = scmp.ne.s32.totalorder %s271, %s273
    %p280 = scmp.eq.s32.totalorder %s22, 7
    %p281 = por %p279, %p280
    %p282 = scmp.ne.s32.totalorder %s273, %s274
    %p283 = scmp.eq.s32.totalorder %s22, 0
    %p284 = por %p282, %p283
    %p285 = scmp.ne.s32.totalorder %s273, %s274
    %p286 = scmp.eq.s32.totalorder %s23, 7
    %p287 = por %p285, %p286
    %p289 = scmp.ne.s32.totalorder %s274, %s288
    %p290 = scmp.eq.s32.totalorder %s23, 0
    %p291 = por %p289, %p290
    %s292 = ssub.s32 %s24, %s36
    %p293 = scmp.eq.s32.totalorder %s292, 0
    %s295 = sadd.s32 %s294, 1
    %s296 = scalar_select %p293, %s294, %s295
    %p299 = pneg %p293
    %p300 = scmp.eq.s32.totalorder %s17, 7
    %p301 = por %p299, %p300
    %p302 = scmp.ne.s32.totalorder %s294, %s297
    %p303 = scmp.eq.s32.totalorder %s17, 0
    %p304 = por %p302, %p303
    %p305 = scmp.ne.s32.totalorder %s294, %s297
    %p306 = scmp.eq.s32.totalorder %s22, 7
    %p307 = por %p305, %p306
    %p308 = scmp.ne.s32.totalorder %s297, %s298
    %p309 = scmp.eq.s32.totalorder %s22, 0
    %p310 = por %p308, %p309
    %p311 = scmp.ne.s32.totalorder %s297, %s298
    %p312 = scmp.eq.s32.totalorder %s23, 7
    %p313 = por %p311, %p312
    %p315 = scmp.ne.s32.totalorder %s298, %s314
    %p316 = scmp.eq.s32.totalorder %s23, 0
    %p317 = por %p315, %p316
    %p318 = scmp.le.s32.totalorder 1, %s17
    %p319 = scmp.lt.s32.totalorder %s17, 9
    %p320 = pnand %p318, %p319
    %p321 = pneg %p320
    // Predicated region
    $region9: #{grad_desc_forward.3} parent=5 // pred_check
      _
    $region10: #{grad_desc_forward.3} parent=5 // pred_check_branch
      %323 = sbr.rel (%p320) target = $region12
    $region11: #{grad_desc_forward.3} parent=5 // pred_region
      %s324 = ssub.s32 %s17, 1
      // Predicated region
      $region13: #{grad_desc_forward.3} parent=11 // pred_check
        %p325 = pneg %p158
      $region14: #{grad_desc_forward.3} parent=11 // pred_check_branch
        %327 = sbr.rel (%p325) target = $region16
      $region15: #{grad_desc_forward.3} parent=11 // pred_region
        _
      $region16: #{grad_desc_forward.3} parent=11 // pred_fallthru
        _
      // Predicated region
      $region17: #{grad_desc_forward.3} parent=11 // pred_check
        %p328 = pneg %p179
      $region18: #{grad_desc_forward.3} parent=11 // pred_check_branch
        %330 = sbr.rel (%p328) target = $region20
      $region19: #{grad_desc_forward.3} parent=11 // pred_region
        _
      $region20: #{grad_desc_forward.3} parent=11 // pred_fallthru
        _
      // Predicated region
      $region21: #{grad_desc_forward.3} parent=11 // pred_check
        %p331 = pneg %p200
      $region22: #{grad_desc_forward.3} parent=11 // pred_check_branch
        %333 = sbr.rel (%p331) target = $region24
      $region23: #{grad_desc_forward.3} parent=11 // pred_region
        _
      $region24: #{grad_desc_forward.3} parent=11 // pred_fallthru
        _
      // Predicated region
      $region25: #{grad_desc_forward.3} parent=11 // pred_check
        %p334 = pneg %p221
      $region26: #{grad_desc_forward.3} parent=11 // pred_check_branch
        %336 = sbr.rel (%p334) target = $region28
      $region27: #{grad_desc_forward.3} parent=11 // pred_region
        _
      $region28: #{grad_desc_forward.3} parent=11 // pred_fallthru
        _
      // Predicated region
      $region29: #{grad_desc_forward.3} parent=11 // pred_check
        %p337 = pneg %p242
      $region30: #{grad_desc_forward.3} parent=11 // pred_check_branch
        %339 = sbr.rel (%p337) target = $region32
      $region31: #{grad_desc_forward.3} parent=11 // pred_region
        _
      $region32: #{grad_desc_forward.3} parent=11 // pred_fallthru
        _
      // Predicated region
      $region33: #{grad_desc_forward.3} parent=11 // pred_check
        %p340 = pneg %p263
      $region34: #{grad_desc_forward.3} parent=11 // pred_check_branch
        %342 = sbr.rel (%p340) target = $region36
      $region35: #{grad_desc_forward.3} parent=11 // pred_region
        _
      $region36: #{grad_desc_forward.3} parent=11 // pred_fallthru
        _
      // Predicated region
      $region37: #{grad_desc_forward.3} parent=11 // pred_check
        %p343 = pneg %p284
      $region38: #{grad_desc_forward.3} parent=11 // pred_check_branch
        %345 = sbr.rel (%p343) target = $region40
      $region39: #{grad_desc_forward.3} parent=11 // pred_region
        _
      $region40: #{grad_desc_forward.3} parent=11 // pred_fallthru
        _
    $region12: #{grad_desc_forward.3} parent=5 // pred_fallthru
      _
    %p346 = scmp.lt.s32.totalorder %s17, 8
    // Predicated region
    $region41: #{grad_desc_forward.3} parent=5 // pred_check
      %p347 = pneg %p346
    $region42: #{grad_desc_forward.3} parent=5 // pred_check_branch
      %349 = sbr.rel (%p347) target = $region44
    $region43: #{grad_desc_forward.3} parent=5 // pred_region
      // Predicated region
      $region45: #{grad_desc_forward.3} parent=43 // pred_check
        %p350 = pneg %p49
      $region46: #{grad_desc_forward.3} parent=43 // pred_check_branch
        %352 = sbr.rel (%p350) target = $region48
      $region47: #{grad_desc_forward.3} parent=43 // pred_region
        %p353 = scmp.lt.s32.totalorder %s24, 1
        %s354 = scalar_select %p353, %s24, 1
        %s355 = smul.addr %s354, 2
        %s356 = smul.addr %s355, 8
        %s357 = scalar_lea.vmem %s0, %s356
      $region48: #{grad_desc_forward.3} parent=43 // pred_fallthru
        _
      // Predicated region
      $region49: #{grad_desc_forward.3} parent=43 // pred_check
        %p358 = pneg %p75
      $region50: #{grad_desc_forward.3} parent=43 // pred_check_branch
        %360 = sbr.rel (%p358) target = $region52
      $region51: #{grad_desc_forward.3} parent=43 // pred_region
        %p361 = scmp.lt.s32.totalorder %s24, 1
        %s362 = scalar_select %p361, %s24, 1
        %s363 = smul.addr %s362, 2
        %s364 = smul.addr %s363, 8
        %s365 = scalar_lea.vmem %s1, %s364
      $region52: #{grad_desc_forward.3} parent=43 // pred_fallthru
        _
      // Predicated region
      $region53: #{grad_desc_forward.3} parent=43 // pred_check
        %p366 = pneg %p103
      $region54: #{grad_desc_forward.3} parent=43 // pred_check_branch
        %368 = sbr.rel (%p366) target = $region56
      $region55: #{grad_desc_forward.3} parent=43 // pred_region
        %p369 = scmp.lt.s32.totalorder %s24, 1
        %s370 = scalar_select %p369, %s24, 1
        %p371 = scmp.lt.s32.totalorder %s25, 3
        %s372 = scalar_select %p371, %s25, 3
        %s373 = smul.addr %s372, 2
        %s374 = smul.addr %s370, 8
        %s375 = sadd.s32 %s373, %s374
        %s376 = smul.addr %s375, 8
        %s377 = scalar_lea.vmem %s2, %s376
      $region56: #{grad_desc_forward.3} parent=43 // pred_fallthru
        _
      // Predicated region
      $region57: #{grad_desc_forward.3} parent=43 // pred_check
        %p378 = pneg %p131
      $region58: #{grad_desc_forward.3} parent=43 // pred_check_branch
        %380 = sbr.rel (%p378) target = $region60
      $region59: #{grad_desc_forward.3} parent=43 // pred_region
        %p381 = scmp.lt.s32.totalorder %s24, 1
        %s382 = scalar_select %p381, %s24, 1
        %p383 = scmp.lt.s32.totalorder %s25, 3
        %s384 = scalar_select %p383, %s25, 3
        %s385 = smul.addr %s384, 2
        %s386 = smul.addr %s382, 8
        %s387 = sadd.s32 %s385, %s386
        %s388 = smul.addr %s387, 8
        %s389 = scalar_lea.vmem %s3, %s388
      $region60: #{grad_desc_forward.3} parent=43 // pred_fallthru
        _
    $region44: #{grad_desc_forward.3} parent=5 // pred_fallthru
      _
    %p390 = scmp.le.s32.totalorder 1, %s17
    %p391 = scmp.lt.s32.totalorder %s17, 9
    %p392 = pnand %p390, %p391
    %p393 = pneg %p392
    // Predicated region
    $region61: #{grad_desc_forward.3} parent=5 // pred_check
      _
    $region62: #{grad_desc_forward.3} parent=5 // pred_check_branch
      %395 = sbr.rel (%p392) target = $region64
    $region63: #{grad_desc_forward.3} parent=5 // pred_region
      %s396 = ssub.s32 %s17, 1
      %p397 = scmp.lt.s32.totalorder %s26, 1
      %s398 = scalar_select %p397, %s26, 1
      %s399 = smul.addr %s398, 2
      %s400 = smul.addr %s399, 8
      %s401 = scalar_lea.vmem %s0, %s400
      %p402 = pneg %p55
      %p403 = pneg %p52
      %p404 = scmp.lt.s32.totalorder %s26, 1
      %s405 = scalar_select %p404, %s26, 1
      %s406 = smul.addr %s405, 2
      %s407 = smul.addr %s406, 8
      %s408 = scalar_lea.vmem %s1, %s407
      %p409 = pneg %p81
      %p410 = pneg %p78
      %p411 = scmp.lt.s32.totalorder %s26, 1
      %s412 = scalar_select %p411, %s26, 1
      %p413 = scmp.lt.s32.totalorder %s27, 3
      %s414 = scalar_select %p413, %s27, 3
      %s415 = smul.addr %s414, 2
      %s416 = smul.addr %s412, 8
      %s417 = sadd.s32 %s415, %s416
      %s418 = smul.addr %s417, 8
      %s419 = scalar_lea.vmem %s2, %s418
      %p420 = pneg %p109
      %p421 = pneg %p106
      %p422 = scmp.lt.s32.totalorder %s26, 1
      %s423 = scalar_select %p422, %s26, 1
      %p424 = scmp.lt.s32.totalorder %s27, 3
      %s425 = scalar_select %p424, %s27, 3
      %s426 = smul.addr %s425, 2
      %s427 = smul.addr %s423, 8
      %s428 = sadd.s32 %s426, %s427
      %s429 = smul.addr %s428, 8
      %s430 = scalar_lea.vmem %s3, %s429
      %p431 = pneg %p137
      %p432 = pneg %p134
      %p433 = pneg %p158
      %p434 = pneg %p155
      %p435 = pneg %p179
      %p436 = pneg %p176
      %p437 = pneg %p200
      %p438 = pneg %p197
      %p439 = pneg %p221
      %p440 = pneg %p218
      %p441 = pneg %p242
      %p442 = pneg %p239
      %p443 = pneg %p263
      %p444 = pneg %p260
      %p445 = pneg %p284
      %p446 = pneg %p281
      %p447 = pneg %p310
      %p448 = pneg %p307
      %p449 = scmp.lt.s32.totalorder %s26, 1
      %s450 = scalar_select %p449, %s26, 1
      %s451 = scalar_lea.vmem %s11, %s450
      %p452 = scmp.lt.s32.totalorder %s26, 1
      %s453 = scalar_select %p452, %s26, 1
      %s454 = smul.addr %s453, 2
      %s455 = smul.addr %s454, 8
      %s456 = scalar_lea.vmem %s0, %s455
      %p457 = scmp.lt.s32.totalorder %s26, 1
      %s458 = scalar_select %p457, %s26, 1
      %s459 = smul.addr %s458, 2
      %s460 = smul.addr %s459, 8
      %s461 = scalar_lea.vmem %s1, %s460
      %p462 = scmp.lt.s32.totalorder %s26, 1
      %s463 = scalar_select %p462, %s26, 1
      %p464 = scmp.lt.s32.totalorder %s27, 3
      %s465 = scalar_select %p464, %s27, 3
      %s466 = smul.addr %s465, 2
      %s467 = smul.addr %s463, 8
      %s468 = sadd.s32 %s466, %s467
      %s469 = smul.addr %s468, 8
      %s470 = scalar_lea.vmem %s2, %s469
      %p471 = scmp.lt.s32.totalorder %s26, 1
      %s472 = scalar_select %p471, %s26, 1
      %p473 = scmp.lt.s32.totalorder %s27, 3
      %s474 = scalar_select %p473, %s27, 3
      %s475 = smul.addr %s474, 2
      %s476 = smul.addr %s472, 8
      %s477 = sadd.s32 %s475, %s476
      %s478 = smul.addr %s477, 8
      %s479 = scalar_lea.vmem %s3, %s478
      %p480 = scmp.lt.s32.totalorder %s26, 1
      %s481 = scalar_select %p480, %s26, 1
      %s482 = scalar_lea.vmem %s11, %s481
      %v483 = vld [vmem:[%s456] sm:$0xff]
      %v484 = vld [vmem:[%s456 + $0x8] sm:$0xff]
      %v485 = vld [vmem:[%s461] sm:$0xff]
      %v486 = vld [vmem:[%s461 + $0x8] sm:$0xff]
      %v487 = vld [vmem:[%s470] sm:$0xff]
      %v488 = vld [vmem:[%s470 + $0x8] sm:$0xff]
      %v489 = vld [vmem:[%s479] sm:$0xff]
      %v490 = vld [vmem:[%s479 + $0x8] sm:$0xff]
      %v491 = vld [vmem:[%s4] sm:$0xff]
      %v492 = vld [vmem:[%s4 + $0x8] sm:$0xff]
      %v493 = vmul.f32 %v483, %v487
      %v494 = vmul.f32 %v484, %v488
      %v495 = vmul.f32 %v485, %v489
      %v496 = vmul.f32 %v486, %v490
      %v497 = vsub.f32 %v493, %v495
      %v498 = vsub.f32 %v494, %v496
      %v499 = vmul.f32 %v483, %v489
      %v500 = vmul.f32 %v484, %v490
      %v501 = vmul.f32 %v485, %v487
      %v502 = vmul.f32 %v486, %v488
      %v503 = vadd.f32 %v499, %v501
      %v504 = vadd.f32 %v500, %v502
      %v505 = vld [vmem:[%s5] sm:$0xff]
      %v506 = vld [vmem:[%s5 + $0x8] sm:$0xff]
      %v507 = vld [vmem:[%s6] sm:$0xff]
      %v508 = vld [vmem:[%s6 + $0x8] sm:$0xff]
      %v509 = vld [vmem:[%s7] sm:$0xff]
      %v510 = vld [vmem:[%s7 + $0x8] sm:$0xff]
      %v511 = vadd.f32 %v497, %v503
      %v512 = vadd.f32 %v498, %v504
      %vm513 = vcmask 130048
      %v515 = vsel %vm513, %v505, 0
      %v518 = vsel %vm513, %v506, 0
      %520 = vmatpush.msra.mxu0 0.0
      %521 = vmatpush.msra.mxu0 0.0
      %522 = vmatpush.msra.mxu0 0.0
      %523 = vmatpush.msra.mxu0 0.0
      %524 = vmatpush.msra.mxu0 0.0
      %525 = vmatpush.msra.mxu0 0.0
      %526 = vmatpush.msra.mxu0 0.0
      %527 = vmatpush.msra.mxu0 0.0
      %528 = vmatpush.msra.mxu0 0.0
      %529 = vmatpush.msra.mxu0 0.0
      %530 = vmatpush.msra.mxu0 0.0
      %531 = vmatpush.msra.mxu0 0.0
      %532 = vmatpush.msra.mxu0 0.0
      %533 = vmatpush.msra.mxu0 0.0
      %534 = vmatpush.msra.mxu0 %v512
      %535 = vmatpush.msra.mxu0 %v511
      %536 = vmatmul.f32.gmra.mxu0 %v515
      %v537 = vpop.f32.mrf.mxu0
      %v538 = vadd.f32 0.0, %v537
      %539 = vmatmul.f32.gmra.mxu0 %v518
      %v540 = vpop.f32.mrf.mxu0
      %v541 = vadd.f32 0.0, %v540
      %542 = vdwg.mxu0
      %v544 = vsel %vm513, %v507, 0
      %v547 = vsel %vm513, %v508, 0
      %549 = vmatpush.msra.mxu0 0.0
      %550 = vmatpush.msra.mxu0 0.0
      %551 = vmatpush.msra.mxu0 0.0
      %552 = vmatpush.msra.mxu0 0.0
      %553 = vmatpush.msra.mxu0 0.0
      %554 = vmatpush.msra.mxu0 0.0
      %555 = vmatpush.msra.mxu0 0.0
      %556 = vmatpush.msra.mxu0 0.0
      %557 = vmatpush.msra.mxu0 0.0
      %558 = vmatpush.msra.mxu0 0.0
      %559 = vmatpush.msra.mxu0 0.0
      %560 = vmatpush.msra.mxu0 0.0
      %561 = vmatpush.msra.mxu0 0.0
      %562 = vmatpush.msra.mxu0 0.0
      %563 = vmatpush.msra.mxu0 %v504
      %564 = vmatpush.msra.mxu0 %v503
      %565 = vmatmul.f32.gmra.mxu0 %v544
      %v566 = vpop.f32.mrf.mxu0
      %v567 = vadd.f32 0.0, %v566
      %568 = vmatmul.f32.gmra.mxu0 %v547
      %v569 = vpop.f32.mrf.mxu0
      %v570 = vadd.f32 0.0, %v569
      %571 = vdwg.mxu0
      %v573 = vsel %vm513, %v509, 0
      %v576 = vsel %vm513, %v510, 0
      %578 = vmatpush.msra.mxu0 0.0
      %579 = vmatpush.msra.mxu0 0.0
      %580 = vmatpush.msra.mxu0 0.0
      %581 = vmatpush.msra.mxu0 0.0
      %582 = vmatpush.msra.mxu0 0.0
      %583 = vmatpush.msra.mxu0 0.0
      %584 = vmatpush.msra.mxu0 0.0
      %585 = vmatpush.msra.mxu0 0.0
      %586 = vmatpush.msra.mxu0 0.0
      %587 = vmatpush.msra.mxu0 0.0
      %588 = vmatpush.msra.mxu0 0.0
      %589 = vmatpush.msra.mxu0 0.0
      %590 = vmatpush.msra.mxu0 0.0
      %591 = vmatpush.msra.mxu0 0.0
      %592 = vmatpush.msra.mxu0 %v498
      %593 = vmatpush.msra.mxu0 %v497
      %594 = vmatmul.f32.gmra.mxu0 %v573
      %v595 = vpop.f32.mrf.mxu0
      %v596 = vadd.f32 0.0, %v595
      %597 = vmatmul.f32.gmra.mxu0 %v576
      %v598 = vpop.f32.mrf.mxu0
      %v599 = vadd.f32 0.0, %v598
      %600 = vdwg.mxu0
      %v601 = vsub.f32 %v538, %v567
      %v602 = vsub.f32 %v541, %v570
      %v603 = vadd.f32 %v538, %v596
      %v604 = vadd.f32 %v541, %v599
      %v605 = vld [vmem:[%s8] sm:$0xff]
      %v606 = vld [vmem:[%s8 + $0x8] sm:$0xff]
      %v607 = vld [vmem:[%s9] sm:$0xff]
      %v608 = vld [vmem:[%s9 + $0x8] sm:$0xff]
      %v609 = vld [vmem:[%s10] sm:$0xff]
      %v610 = vld [vmem:[%s10 + $0x8] sm:$0xff]
      %v611 = vadd.f32 %v601, %v603
      %v612 = vadd.f32 %v602, %v604
      %v614 = vsel %vm513, %v611, 0
      %v617 = vsel %vm513, %v612, 0
      %619 = vmatpush.msra.mxu0 0.0
      %620 = vmatpush.msra.mxu0 0.0
      %621 = vmatpush.msra.mxu0 0.0
      %622 = vmatpush.msra.mxu0 0.0
      %623 = vmatpush.msra.mxu0 0.0
      %624 = vmatpush.msra.mxu0 0.0
      %625 = vmatpush.msra.mxu0 0.0
      %626 = vmatpush.msra.mxu0 0.0
      %627 = vmatpush.msra.mxu0 0.0
      %628 = vmatpush.msra.mxu0 0.0
      %629 = vmatpush.msra.mxu0 0.0
      %630 = vmatpush.msra.mxu0 0.0
      %631 = vmatpush.msra.mxu0 0.0
      %632 = vmatpush.msra.mxu0 0.0
      %633 = vmatpush.msra.mxu0 %v606
      %634 = vmatpush.msra.mxu0 %v605
      %635 = vmatmul.f32.gmra.mxu0 %v614
      %v636 = vpop.f32.mrf.mxu0
      %v637 = vadd.f32 0.0, %v636
      %638 = vmatmul.f32.gmra.mxu0 %v617
      %v639 = vpop.f32.mrf.mxu0
      %v640 = vadd.f32 0.0, %v639
      %641 = vdwg.mxu0
      %v643 = vsel %vm513, %v603, 0
      %v646 = vsel %vm513, %v604, 0
      %648 = vmatpush.msra.mxu0 0.0
      %649 = vmatpush.msra.mxu0 0.0
      %650 = vmatpush.msra.mxu0 0.0
      %651 = vmatpush.msra.mxu0 0.0
      %652 = vmatpush.msra.mxu0 0.0
      %653 = vmatpush.msra.mxu0 0.0
      %654 = vmatpush.msra.mxu0 0.0
      %655 = vmatpush.msra.mxu0 0.0
      %656 = vmatpush.msra.mxu0 0.0
      %657 = vmatpush.msra.mxu0 0.0
      %658 = vmatpush.msra.mxu0 0.0
      %659 = vmatpush.msra.mxu0 0.0
      %660 = vmatpush.msra.mxu0 0.0
      %661 = vmatpush.msra.mxu0 0.0
      %662 = vmatpush.msra.mxu0 %v608
      %663 = vmatpush.msra.mxu0 %v607
      %664 = vmatmul.f32.gmra.mxu0 %v643
      %v665 = vpop.f32.mrf.mxu0
      %v666 = vadd.f32 0.0, %v665
      %667 = vmatmul.f32.gmra.mxu0 %v646
      %v668 = vpop.f32.mrf.mxu0
      %v669 = vadd.f32 0.0, %v668
      %670 = vdwg.mxu0
      %v672 = vsel %vm513, %v601, 0
      %v675 = vsel %vm513, %v602, 0
      %677 = vmatpush.msra.mxu0 0.0
      %678 = vmatpush.msra.mxu0 0.0
      %679 = vmatpush.msra.mxu0 0.0
      %680 = vmatpush.msra.mxu0 0.0
      %681 = vmatpush.msra.mxu0 0.0
      %682 = vmatpush.msra.mxu0 0.0
      %683 = vmatpush.msra.mxu0 0.0
      %684 = vmatpush.msra.mxu0 0.0
      %685 = vmatpush.msra.mxu0 0.0
      %686 = vmatpush.msra.mxu0 0.0
      %687 = vmatpush.msra.mxu0 0.0
      %688 = vmatpush.msra.mxu0 0.0
      %689 = vmatpush.msra.mxu0 0.0
      %690 = vmatpush.msra.mxu0 0.0
      %691 = vmatpush.msra.mxu0 %v610
      %692 = vmatpush.msra.mxu0 %v609
      %693 = vmatmul.f32.gmra.mxu0 %v672
      %v694 = vpop.f32.mrf.mxu0
      %v695 = vadd.f32 0.0, %v694
      %696 = vmatmul.f32.gmra.mxu0 %v675
      %v697 = vpop.f32.mrf.mxu0
      %v698 = vadd.f32 0.0, %v697
      %699 = vdwg.mxu0
      %v700 = vsub.f32 %v637, %v666
      %v701 = vsub.f32 %v640, %v669
      %v702 = vadd.f32 %v637, %v695
      %v703 = vadd.f32 %v640, %v698
      %v704 = vmul.f32 %v700, %v491
      %v705 = vmul.f32 %v701, %v492
      %v706 = vmul.f32 %v702, %v491
      %v707 = vmul.f32 %v703, %v492
      %v708 = vmul.f32 %v704, %v704
      %v709 = vmul.f32 %v705, %v705
      %v710 = vmul.f32 %v706, %v706
      %v711 = vmul.f32 %v707, %v707
      %v712 = vadd.f32 %v708, %v710
      %v713 = vadd.f32 %v709, %v711
      %v714 = vsel %vm513, %v712, 0.0
      %715 = vadd.xlane.f32.xlu0 %v714
      %v716 = vpop.xlane.xlu0 %715
      %v717 = vsel %vm513, %v713, 0.0
      %718 = vadd.xlane.f32.xlu0 %v717
      %v719 = vpop.xlane.xlu0 %718
      %v720 = vadd.f32 %v716, %v719
      %v721 = vrot.slane %v720, 4
      %v722 = vadd.f32 %v720, %v721
      %v723 = vrot.slane %v722, 2
      %v724 = vadd.f32 %v722, %v723
      %v725 = vrot.slane %v724, 1
      %v726 = vadd.f32 %v724, %v725
      %p727 = scmp.eq.s32.totalorder %s27, 0
      // Predicated region
      $region65: #{grad_desc_forward.3} parent=63 // pred_check
        %p728 = pneg %p727
      $region66: #{grad_desc_forward.3} parent=63 // pred_check_branch
        %730 = sbr.rel (%p728) target = $region68
      $region67: #{grad_desc_forward.3} parent=63 // pred_region
        %vm731 = vcmask 0
        %732 = vst.msk [vmem:[%s482] sm:$0x1] %vm731, %v726
      $region68: #{grad_desc_forward.3} parent=63 // pred_fallthru
        _
      %p733 = scmp.gt.s32.totalorder %s27, 0
      // Predicated region
      $region69: #{grad_desc_forward.3} parent=63 // pred_check
        %p734 = pneg %p733
      $region70: #{grad_desc_forward.3} parent=63 // pred_check_branch
        %736 = sbr.rel (%p734) target = $region72
      $region71: #{grad_desc_forward.3} parent=63 // pred_region
        %v737 = vld [vmem:[%s482] sm:$0x1]
        %v738 = vadd.f32 %v737, %v726
        %vm739 = vcmask 0
        %740 = vst.msk [vmem:[%s482] sm:$0x1] %vm739, %v738
      $region72: #{grad_desc_forward.3} parent=63 // pred_fallthru
        _
      %p741 = scmp.lt.s32.totalorder %s26, 1
      %s742 = scalar_select %p741, %s26, 1
      %s743 = scalar_lea.vmem %s11, %s742
      // Predicated region
      $region73: #{grad_desc_forward.3} parent=63 // pred_check
        %p744 = pneg %p307
      $region74: #{grad_desc_forward.3} parent=63 // pred_check_branch
        %746 = sbr.rel (%p744) target = $region76
      $region75: #{grad_desc_forward.3} parent=63 // pred_region
        _
      $region76: #{grad_desc_forward.3} parent=63 // pred_fallthru
        _
    $region64: #{grad_desc_forward.3} parent=5 // pred_fallthru
      _
    %p747 = scmp.le.s32.totalorder 2, %s17
    // Predicated region
    $region77: #{grad_desc_forward.3} parent=5 // pred_check
      %p748 = pneg %p747
    $region78: #{grad_desc_forward.3} parent=5 // pred_check_branch
      %750 = sbr.rel (%p748) target = $region80
    $region79: #{grad_desc_forward.3} parent=5 // pred_region
      %s751 = ssub.s32 %s17, 2
      // Predicated region
      $region81: #{grad_desc_forward.3} parent=79 // pred_check
        %p752 = pneg %p313
      $region82: #{grad_desc_forward.3} parent=79 // pred_check_branch
        %754 = sbr.rel (%p752) target = $region84
      $region83: #{grad_desc_forward.3} parent=79 // pred_region
        %p755 = scmp.lt.s32.totalorder %s28, 1
        %s756 = scalar_select %p755, %s28, 1
        %s757 = scalar_lea.vmem %s11, %s756
      $region84: #{grad_desc_forward.3} parent=79 // pred_fallthru
        _
    $region80: #{grad_desc_forward.3} parent=5 // pred_fallthru
      _
  $region6: #{grad_desc_forward.3} parent=0 // loop_footer
    %s21 = sadd.s32 1, %s17
  $region7: #{grad_desc_forward.3} parent=0 // loop_footer_branch
    %16 = sbr.rel target = $region3
  $region8: #{grad_desc_forward.3} parent=0 // loop_exit
    _

// kernel: grad_desc_forward.2
$region0: #{grad_desc_forward.2}
  #allocation0 [shape = 'u32[]', space=smem, size = 0x4, offset = 0x4, fixed_abs, tag = 'smem constant byte address 0x4 - core index']
  #allocation1 [shape = 'u32[72,128]{1,0:T(1,128)}', space=vmem, size = 0x9000, scoped, tag = 'internal scratch']
  %s0 = inlined_call_operand.vmem [shape: f32[2,16,16], index: 0, kind: input, shape index: {}]
  %s1 = inlined_call_operand.vmem [shape: f32[2,16,16], index: 1, kind: input, shape index: {}]
  %s2 = inlined_call_operand.vmem [shape: f32[2,4,16,16], index: 2, kind: input, shape index: {}]
  %s3 = inlined_call_operand.vmem [shape: f32[2,4,16,16], index: 3, kind: input, shape index: {}]
  %s4 = inlined_call_operand.vmem [shape: f32[2,4,16,16], index: 4, kind: input, shape index: {}]
  %s5 = inlined_call_operand.vmem [shape: f32[2,4,16,16], index: 5, kind: input, shape index: {}]
  %s6 = inlined_call_operand.vmem [shape: f32[16,16], index: 6, kind: input, shape index: {}]
  %s7 = inlined_call_operand.vmem [shape: f32[16,16], index: 7, kind: input, shape index: {}]
  %s8 = inlined_call_operand.vmem [shape: f32[16,16], index: 8, kind: input, shape index: {}]
  %s9 = inlined_call_operand.vmem [shape: f32[16,16], index: 9, kind: input, shape index: {}]
  %s10 = inlined_call_operand.vmem [shape: f32[16,16], index: 10, kind: input, shape index: {}]
  %s11 = inlined_call_operand.vmem [shape: f32[16,16], index: 11, kind: input, shape index: {}]
  %s12 = inlined_call_operand.vmem [shape: f32[16,16], index: 12, kind: input, shape index: {}]
  %s13 = inlined_call_operand.vmem [shape: f32[2,16,16], index: 13, kind: output, shape index: {0}]
  %s14 = inlined_call_operand.vmem [shape: f32[2,16,16], index: 14, kind: output, shape index: {1}]
  %s15 = inlined_call_operand.vmem [shape: f32[2,1,1], index: 15, kind: output, shape index: {2}]
  %16 = xla_tuple %s13, %s14, %s15
  %s17 = sld [smem:[#allocation0]]
  $region109: #{grad_desc_forward.2} parent=0
    _
  %s19 = ssub.s32 1, %s17
  %s20 = scalar_select 0, %s19, %s17
  loop: start=0, step=1, limit=10
  $region2: #{grad_desc_forward.2} parent=0 // loop_pre_header
    _
  $region3: #{grad_desc_forward.2} parent=0 // loop_header
    %s22 = sphi 0, %s26
    %p23 = scmp.ge.s32.totalorder %s22, 10
    %s29 = sphi 0, %s41
    %s30 = sphi 0, %s37
    %s31 = sphi 0, %s29
    %s32 = sphi 0, %s30
    %s33 = sphi 0, %s31
    %s34 = sphi 0, %s32
    %s44 = sphi 0, %s46
    %s47 = sphi 0, %s44
    %s48 = sphi 0, %s47
    %s64 = sphi 0, %s48
    %s70 = sphi 0, %s72
    %s73 = sphi 0, %s70
    %s74 = sphi 0, %s73
    %s90 = sphi 0, %s74
    %s98 = sphi 0, %s100
    %s101 = sphi 0, %s98
    %s102 = sphi 0, %s101
    %s118 = sphi 0, %s102
    %s126 = sphi 0, %s128
    %s129 = sphi 0, %s126
    %s130 = sphi 0, %s129
    %s146 = sphi 0, %s130
    %s154 = sphi 0, %s156
    %s157 = sphi 0, %s154
    %s158 = sphi 0, %s157
    %s174 = sphi 0, %s158
    %s182 = sphi 0, %s184
    %s185 = sphi 0, %s182
    %s186 = sphi 0, %s185
    %s202 = sphi 0, %s186
    %s206 = sphi 0, %s206
    %s208 = sphi 0, %s206
    %s209 = sphi 0, %s208
    %s223 = sphi 0, %s209
    %s227 = sphi 0, %s227
    %s229 = sphi 0, %s227
    %s230 = sphi 0, %s229
    %s244 = sphi 0, %s230
    %s248 = sphi 0, %s248
    %s250 = sphi 0, %s248
    %s251 = sphi 0, %s250
    %s265 = sphi 0, %s251
    %s269 = sphi 0, %s269
    %s271 = sphi 0, %s269
    %s272 = sphi 0, %s271
    %s286 = sphi 0, %s272
    %s290 = sphi 0, %s290
    %s292 = sphi 0, %s290
    %s293 = sphi 0, %s292
    %s307 = sphi 0, %s293
    %s311 = sphi 0, %s311
    %s313 = sphi 0, %s311
    %s314 = sphi 0, %s313
    %s328 = sphi 0, %s314
    %s332 = sphi 0, %s332
    %s334 = sphi 0, %s332
    %s335 = sphi 0, %s334
    %s349 = sphi 0, %s335
    %s355 = sphi 0, %s357
    %s358 = sphi 0, %s355
    %s359 = sphi 0, %s358
    %s375 = sphi 0, %s359
    %s381 = sphi 0, %s383
    %s384 = sphi 0, %s381
    %s385 = sphi 0, %s384
    %s401 = sphi 0, %s385
    %s407 = sphi 0, %s409
    %s410 = sphi 0, %s407
    %s411 = sphi 0, %s410
    %s427 = sphi 0, %s411
  $region4: #{grad_desc_forward.2} parent=0 // loop_header_branch
    %25 = sbr.rel (%p23) target = $region8
  $region5: #{grad_desc_forward.2} parent=0 // loop_body
    %s27 = ssub.s32 %s22, 1
    %s28 = ssub.s32 %s22, 2
    %s35 = sadd.s32 1, %s30
    %p36 = scmp.ge.s32.totalorder %s35, 4
    %s37 = scalar_select %p36, 0, %s35
    %s38 = sadd.s32 1, %s29
    %s39 = scalar_select %p36, %s38, %s29
    %p40 = scmp.ge.s32.totalorder %s39, 2
    %s41 = scalar_select %p40, 0, %s39
    %s42 = ssub.s32 %s29, %s41
    %p43 = scmp.eq.s32.totalorder %s42, 0
    %s45 = sadd.s32 %s44, 1
    %s46 = scalar_select %p43, %s44, %s45
    %p49 = pneg %p43
    %p50 = scmp.eq.s32.totalorder %s22, 7
    %p51 = por %p49, %p50
    %p52 = scmp.ne.s32.totalorder %s44, %s47
    %p53 = scmp.eq.s32.totalorder %s22, 0
    %p54 = por %p52, %p53
    %p55 = scmp.ne.s32.totalorder %s44, %s47
    %p56 = scmp.eq.s32.totalorder %s27, 7
    %p57 = por %p55, %p56
    %p58 = scmp.ne.s32.totalorder %s47, %s48
    %p59 = scmp.eq.s32.totalorder %s27, 0
    %p60 = por %p58, %p59
    %p61 = scmp.ne.s32.totalorder %s47, %s48
    %p62 = scmp.eq.s32.totalorder %s28, 7
    %p63 = por %p61, %p62
    %p65 = scmp.ne.s32.totalorder %s48, %s64
    %p66 = scmp.eq.s32.totalorder %s28, 0
    %p67 = por %p65, %p66
    %s68 = ssub.s32 %s29, %s41
    %p69 = scmp.eq.s32.totalorder %s68, 0
    %s71 = sadd.s32 %s70, 1
    %s72 = scalar_select %p69, %s70, %s71
    %p75 = pneg %p69
    %p76 = scmp.eq.s32.totalorder %s22, 7
    %p77 = por %p75, %p76
    %p78 = scmp.ne.s32.totalorder %s70, %s73
    %p79 = scmp.eq.s32.totalorder %s22, 0
    %p80 = por %p78, %p79
    %p81 = scmp.ne.s32.totalorder %s70, %s73
    %p82 = scmp.eq.s32.totalorder %s27, 7
    %p83 = por %p81, %p82
    %p84 = scmp.ne.s32.totalorder %s73, %s74
    %p85 = scmp.eq.s32.totalorder %s27, 0
    %p86 = por %p84, %p85
    %p87 = scmp.ne.s32.totalorder %s73, %s74
    %p88 = scmp.eq.s32.totalorder %s28, 7
    %p89 = por %p87, %p88
    %p91 = scmp.ne.s32.totalorder %s74, %s90
    %p92 = scmp.eq.s32.totalorder %s28, 0
    %p93 = por %p91, %p92
    %s94 = ssub.s32 %s29, %s41
    %s95 = ssub.s32 %s30, %s37
    %s96 = sor.u32 %s94, %s95
    %p97 = scmp.eq.s32.totalorder %s96, 0
    %s99 = sadd.s32 %s98, 1
    %s100 = scalar_select %p97, %s98, %s99
    %p103 = pneg %p97
    %p104 = scmp.eq.s32.totalorder %s22, 7
    %p105 = por %p103, %p104
    %p106 = scmp.ne.s32.totalorder %s98, %s101
    %p107 = scmp.eq.s32.totalorder %s22, 0
    %p108 = por %p106, %p107
    %p109 = scmp.ne.s32.totalorder %s98, %s101
    %p110 = scmp.eq.s32.totalorder %s27, 7
    %p111 = por %p109, %p110
    %p112 = scmp.ne.s32.totalorder %s101, %s102
    %p113 = scmp.eq.s32.totalorder %s27, 0
    %p114 = por %p112, %p113
    %p115 = scmp.ne.s32.totalorder %s101, %s102
    %p116 = scmp.eq.s32.totalorder %s28, 7
    %p117 = por %p115, %p116
    %p119 = scmp.ne.s32.totalorder %s102, %s118
    %p120 = scmp.eq.s32.totalorder %s28, 0
    %p121 = por %p119, %p120
    %s122 = ssub.s32 %s29, %s41
    %s123 = ssub.s32 %s30, %s37
    %s124 = sor.u32 %s122, %s123
    %p125 = scmp.eq.s32.totalorder %s124, 0
    %s127 = sadd.s32 %s126, 1
    %s128 = scalar_select %p125, %s126, %s127
    %p131 = pneg %p125
    %p132 = scmp.eq.s32.totalorder %s22, 7
    %p133 = por %p131, %p132
    %p134 = scmp.ne.s32.totalorder %s126, %s129
    %p135 = scmp.eq.s32.totalorder %s22, 0
    %p136 = por %p134, %p135
    %p137 = scmp.ne.s32.totalorder %s126, %s129
    %p138 = scmp.eq.s32.totalorder %s27, 7
    %p139 = por %p137, %p138
    %p140 = scmp.ne.s32.totalorder %s129, %s130
    %p141 = scmp.eq.s32.totalorder %s27, 0
    %p142 = por %p140, %p141
    %p143 = scmp.ne.s32.totalorder %s129, %s130
    %p144 = scmp.eq.s32.totalorder %s28, 7
    %p145 = por %p143, %p144
    %p147 = scmp.ne.s32.totalorder %s130, %s146
    %p148 = scmp.eq.s32.totalorder %s28, 0
    %p149 = por %p147, %p148
    %s150 = ssub.s32 %s29, %s41
    %s151 = ssub.s32 %s30, %s37
    %s152 = sor.u32 %s150, %s151
    %p153 = scmp.eq.s32.totalorder %s152, 0
    %s155 = sadd.s32 %s154, 1
    %s156 = scalar_select %p153, %s154, %s155
    %p159 = pneg %p153
    %p160 = scmp.eq.s32.totalorder %s22, 7
    %p161 = por %p159, %p160
    %p162 = scmp.ne.s32.totalorder %s154, %s157
    %p163 = scmp.eq.s32.totalorder %s22, 0
    %p164 = por %p162, %p163
    %p165 = scmp.ne.s32.totalorder %s154, %s157
    %p166 = scmp.eq.s32.totalorder %s27, 7
    %p167 = por %p165, %p166
    %p168 = scmp.ne.s32.totalorder %s157, %s158
    %p169 = scmp.eq.s32.totalorder %s27, 0
    %p170 = por %p168, %p169
    %p171 = scmp.ne.s32.totalorder %s157, %s158
    %p172 = scmp.eq.s32.totalorder %s28, 7
    %p173 = por %p171, %p172
    %p175 = scmp.ne.s32.totalorder %s158, %s174
    %p176 = scmp.eq.s32.totalorder %s28, 0
    %p177 = por %p175, %p176
    %s178 = ssub.s32 %s29, %s41
    %s179 = ssub.s32 %s30, %s37
    %s180 = sor.u32 %s178, %s179
    %p181 = scmp.eq.s32.totalorder %s180, 0
    %s183 = sadd.s32 %s182, 1
    %s184 = scalar_select %p181, %s182, %s183
    %p187 = pneg %p181
    %p188 = scmp.eq.s32.totalorder %s22, 7
    %p189 = por %p187, %p188
    %p190 = scmp.ne.s32.totalorder %s182, %s185
    %p191 = scmp.eq.s32.totalorder %s22, 0
    %p192 = por %p190, %p191
    %p193 = scmp.ne.s32.totalorder %s182, %s185
    %p194 = scmp.eq.s32.totalorder %s27, 7
    %p195 = por %p193, %p194
    %p196 = scmp.ne.s32.totalorder %s185, %s186
    %p197 = scmp.eq.s32.totalorder %s27, 0
    %p198 = por %p196, %p197
    %p199 = scmp.ne.s32.totalorder %s185, %s186
    %p200 = scmp.eq.s32.totalorder %s28, 7
    %p201 = por %p199, %p200
    %p203 = scmp.ne.s32.totalorder %s186, %s202
    %p204 = scmp.eq.s32.totalorder %s28, 0
    %p205 = por %p203, %p204
    %s207 = sadd.s32 %s206, 1
    %p210 = scmp.eq.s32.totalorder %s22, 7
    %p211 = scmp.ne.s32.totalorder %s206, %s208
    %p212 = scmp.eq.s32.totalorder %s22, 0
    %p213 = por %p211, %p212
    %p214 = scmp.ne.s32.totalorder %s206, %s208
    %p215 = scmp.eq.s32.totalorder %s27, 7
    %p216 = por %p214, %p215
    %p217 = scmp.ne.s32.totalorder %s208, %s209
    %p218 = scmp.eq.s32.totalorder %s27, 0
    %p219 = por %p217, %p218
    %p220 = scmp.ne.s32.totalorder %s208, %s209
    %p221 = scmp.eq.s32.totalorder %s28, 7
    %p222 = por %p220, %p221
    %p224 = scmp.ne.s32.totalorder %s209, %s223
    %p225 = scmp.eq.s32.totalorder %s28, 0
    %p226 = por %p224, %p225
    %s228 = sadd.s32 %s227, 1
    %p231 = scmp.eq.s32.totalorder %s22, 7
    %p232 = scmp.ne.s32.totalorder %s227, %s229
    %p233 = scmp.eq.s32.totalorder %s22, 0
    %p234 = por %p232, %p233
    %p235 = scmp.ne.s32.totalorder %s227, %s229
    %p236 = scmp.eq.s32.totalorder %s27, 7
    %p237 = por %p235, %p236
    %p238 = scmp.ne.s32.totalorder %s229, %s230
    %p239 = scmp.eq.s32.totalorder %s27, 0
    %p240 = por %p238, %p239
    %p241 = scmp.ne.s32.totalorder %s229, %s230
    %p242 = scmp.eq.s32.totalorder %s28, 7
    %p243 = por %p241, %p242
    %p245 = scmp.ne.s32.totalorder %s230, %s244
    %p246 = scmp.eq.s32.totalorder %s28, 0
    %p247 = por %p245, %p246
    %s249 = sadd.s32 %s248, 1
    %p252 = scmp.eq.s32.totalorder %s22, 7
    %p253 = scmp.ne.s32.totalorder %s248, %s250
    %p254 = scmp.eq.s32.totalorder %s22, 0
    %p255 = por %p253, %p254
    %p256 = scmp.ne.s32.totalorder %s248, %s250
    %p257 = scmp.eq.s32.totalorder %s27, 7
    %p258 = por %p256, %p257
    %p259 = scmp.ne.s32.totalorder %s250, %s251
    %p260 = scmp.eq.s32.totalorder %s27, 0
    %p261 = por %p259, %p260
    %p262 = scmp.ne.s32.totalorder %s250, %s251
    %p263 = scmp.eq.s32.totalorder %s28, 7
    %p264 = por %p262, %p263
    %p266 = scmp.ne.s32.totalorder %s251, %s265
    %p267 = scmp.eq.s32.totalorder %s28, 0
    %p268 = por %p266, %p267
    %s270 = sadd.s32 %s269, 1
    %p273 = scmp.eq.s32.totalorder %s22, 7
    %p274 = scmp.ne.s32.totalorder %s269, %s271
    %p275 = scmp.eq.s32.totalorder %s22, 0
    %p276 = por %p274, %p275
    %p277 = scmp.ne.s32.totalorder %s269, %s271
    %p278 = scmp.eq.s32.totalorder %s27, 7
    %p279 = por %p277, %p278
    %p280 = scmp.ne.s32.totalorder %s271, %s272
    %p281 = scmp.eq.s32.totalorder %s27, 0
    %p282 = por %p280, %p281
    %p283 = scmp.ne.s32.totalorder %s271, %s272
    %p284 = scmp.eq.s32.totalorder %s28, 7
    %p285 = por %p283, %p284
    %p287 = scmp.ne.s32.totalorder %s272, %s286
    %p288 = scmp.eq.s32.totalorder %s28, 0
    %p289 = por %p287, %p288
    %s291 = sadd.s32 %s290, 1
    %p294 = scmp.eq.s32.totalorder %s22, 7
    %p295 = scmp.ne.s32.totalorder %s290, %s292
    %p296 = scmp.eq.s32.totalorder %s22, 0
    %p297 = por %p295, %p296
    %p298 = scmp.ne.s32.totalorder %s290, %s292
    %p299 = scmp.eq.s32.totalorder %s27, 7
    %p300 = por %p298, %p299
    %p301 = scmp.ne.s32.totalorder %s292, %s293
    %p302 = scmp.eq.s32.totalorder %s27, 0
    %p303 = por %p301, %p302
    %p304 = scmp.ne.s32.totalorder %s292, %s293
    %p305 = scmp.eq.s32.totalorder %s28, 7
    %p306 = por %p304, %p305
    %p308 = scmp.ne.s32.totalorder %s293, %s307
    %p309 = scmp.eq.s32.totalorder %s28, 0
    %p310 = por %p308, %p309
    %s312 = sadd.s32 %s311, 1
    %p315 = scmp.eq.s32.totalorder %s22, 7
    %p316 = scmp.ne.s32.totalorder %s311, %s313
    %p317 = scmp.eq.s32.totalorder %s22, 0
    %p318 = por %p316, %p317
    %p319 = scmp.ne.s32.totalorder %s311, %s313
    %p320 = scmp.eq.s32.totalorder %s27, 7
    %p321 = por %p319, %p320
    %p322 = scmp.ne.s32.totalorder %s313, %s314
    %p323 = scmp.eq.s32.totalorder %s27, 0
    %p324 = por %p322, %p323
    %p325 = scmp.ne.s32.totalorder %s313, %s314
    %p326 = scmp.eq.s32.totalorder %s28, 7
    %p327 = por %p325, %p326
    %p329 = scmp.ne.s32.totalorder %s314, %s328
    %p330 = scmp.eq.s32.totalorder %s28, 0
    %p331 = por %p329, %p330
    %s333 = sadd.s32 %s332, 1
    %p336 = scmp.eq.s32.totalorder %s22, 7
    %p337 = scmp.ne.s32.totalorder %s332, %s334
    %p338 = scmp.eq.s32.totalorder %s22, 0
    %p339 = por %p337, %p338
    %p340 = scmp.ne.s32.totalorder %s332, %s334
    %p341 = scmp.eq.s32.totalorder %s27, 7
    %p342 = por %p340, %p341
    %p343 = scmp.ne.s32.totalorder %s334, %s335
    %p344 = scmp.eq.s32.totalorder %s27, 0
    %p345 = por %p343, %p344
    %p346 = scmp.ne.s32.totalorder %s334, %s335
    %p347 = scmp.eq.s32.totalorder %s28, 7
    %p348 = por %p346, %p347
    %p350 = scmp.ne.s32.totalorder %s335, %s349
    %p351 = scmp.eq.s32.totalorder %s28, 0
    %p352 = por %p350, %p351
    %s353 = ssub.s32 %s29, %s41
    %p354 = scmp.eq.s32.totalorder %s353, 0
    %s356 = sadd.s32 %s355, 1
    %s357 = scalar_select %p354, %s355, %s356
    %p360 = pneg %p354
    %p361 = scmp.eq.s32.totalorder %s22, 7
    %p362 = por %p360, %p361
    %p363 = scmp.ne.s32.totalorder %s355, %s358
    %p364 = scmp.eq.s32.totalorder %s22, 0
    %p365 = por %p363, %p364
    %p366 = scmp.ne.s32.totalorder %s355, %s358
    %p367 = scmp.eq.s32.totalorder %s27, 7
    %p368 = por %p366, %p367
    %p369 = scmp.ne.s32.totalorder %s358, %s359
    %p370 = scmp.eq.s32.totalorder %s27, 0
    %p371 = por %p369, %p370
    %p372 = scmp.ne.s32.totalorder %s358, %s359
    %p373 = scmp.eq.s32.totalorder %s28, 7
    %p374 = por %p372, %p373
    %p376 = scmp.ne.s32.totalorder %s359, %s375
    %p377 = scmp.eq.s32.totalorder %s28, 0
    %p378 = por %p376, %p377
    %s379 = ssub.s32 %s29, %s41
    %p380 = scmp.eq.s32.totalorder %s379, 0
    %s382 = sadd.s32 %s381, 1
    %s383 = scalar_select %p380, %s381, %s382
    %p386 = pneg %p380
    %p387 = scmp.eq.s32.totalorder %s22, 7
    %p388 = por %p386, %p387
    %p389 = scmp.ne.s32.totalorder %s381, %s384
    %p390 = scmp.eq.s32.totalorder %s22, 0
    %p391 = por %p389, %p390
    %p392 = scmp.ne.s32.totalorder %s381, %s384
    %p393 = scmp.eq.s32.totalorder %s27, 7
    %p394 = por %p392, %p393
    %p395 = scmp.ne.s32.totalorder %s384, %s385
    %p396 = scmp.eq.s32.totalorder %s27, 0
    %p397 = por %p395, %p396
    %p398 = scmp.ne.s32.totalorder %s384, %s385
    %p399 = scmp.eq.s32.totalorder %s28, 7
    %p400 = por %p398, %p399
    %p402 = scmp.ne.s32.totalorder %s385, %s401
    %p403 = scmp.eq.s32.totalorder %s28, 0
    %p404 = por %p402, %p403
    %s405 = ssub.s32 %s29, %s41
    %p406 = scmp.eq.s32.totalorder %s405, 0
    %s408 = sadd.s32 %s407, 1
    %s409 = scalar_select %p406, %s407, %s408
    %p412 = pneg %p406
    %p413 = scmp.eq.s32.totalorder %s22, 7
    %p414 = por %p412, %p413
    %p415 = scmp.ne.s32.totalorder %s407, %s410
    %p416 = scmp.eq.s32.totalorder %s22, 0
    %p417 = por %p415, %p416
    %p418 = scmp.ne.s32.totalorder %s407, %s410
    %p419 = scmp.eq.s32.totalorder %s27, 7
    %p420 = por %p418, %p419
    %p421 = scmp.ne.s32.totalorder %s410, %s411
    %p422 = scmp.eq.s32.totalorder %s27, 0
    %p423 = por %p421, %p422
    %p424 = scmp.ne.s32.totalorder %s410, %s411
    %p425 = scmp.eq.s32.totalorder %s28, 7
    %p426 = por %p424, %p425
    %p428 = scmp.ne.s32.totalorder %s411, %s427
    %p429 = scmp.eq.s32.totalorder %s28, 0
    %p430 = por %p428, %p429
    %p431 = scmp.le.s32.totalorder 1, %s22
    %p432 = scmp.lt.s32.totalorder %s22, 9
    %p433 = pnand %p431, %p432
    %p434 = pneg %p433
    // Predicated region
    $region9: #{grad_desc_forward.2} parent=5 // pred_check
      _
    $region10: #{grad_desc_forward.2} parent=5 // pred_check_branch
      %436 = sbr.rel (%p433) target = $region12
    $region11: #{grad_desc_forward.2} parent=5 // pred_region
      %s437 = ssub.s32 %s22, 1
      // Predicated region
      $region13: #{grad_desc_forward.2} parent=11 // pred_check
        %p438 = pneg %p219
      $region14: #{grad_desc_forward.2} parent=11 // pred_check_branch
        %440 = sbr.rel (%p438) target = $region16
      $region15: #{grad_desc_forward.2} parent=11 // pred_region
        _
      $region16: #{grad_desc_forward.2} parent=11 // pred_fallthru
        _
      // Predicated region
      $region17: #{grad_desc_forward.2} parent=11 // pred_check
        %p441 = pneg %p240
      $region18: #{grad_desc_forward.2} parent=11 // pred_check_branch
        %443 = sbr.rel (%p441) target = $region20
      $region19: #{grad_desc_forward.2} parent=11 // pred_region
        _
      $region20: #{grad_desc_forward.2} parent=11 // pred_fallthru
        _
      // Predicated region
      $region21: #{grad_desc_forward.2} parent=11 // pred_check
        %p444 = pneg %p261
      $region22: #{grad_desc_forward.2} parent=11 // pred_check_branch
        %446 = sbr.rel (%p444) target = $region24
      $region23: #{grad_desc_forward.2} parent=11 // pred_region
        _
      $region24: #{grad_desc_forward.2} parent=11 // pred_fallthru
        _
      // Predicated region
      $region25: #{grad_desc_forward.2} parent=11 // pred_check
        %p447 = pneg %p282
      $region26: #{grad_desc_forward.2} parent=11 // pred_check_branch
        %449 = sbr.rel (%p447) target = $region28
      $region27: #{grad_desc_forward.2} parent=11 // pred_region
        _
      $region28: #{grad_desc_forward.2} parent=11 // pred_fallthru
        _
      // Predicated region
      $region29: #{grad_desc_forward.2} parent=11 // pred_check
        %p450 = pneg %p303
      $region30: #{grad_desc_forward.2} parent=11 // pred_check_branch
        %452 = sbr.rel (%p450) target = $region32
      $region31: #{grad_desc_forward.2} parent=11 // pred_region
        _
      $region32: #{grad_desc_forward.2} parent=11 // pred_fallthru
        _
      // Predicated region
      $region33: #{grad_desc_forward.2} parent=11 // pred_check
        %p453 = pneg %p324
      $region34: #{grad_desc_forward.2} parent=11 // pred_check_branch
        %455 = sbr.rel (%p453) target = $region36
      $region35: #{grad_desc_forward.2} parent=11 // pred_region
        _
      $region36: #{grad_desc_forward.2} parent=11 // pred_fallthru
        _
      // Predicated region
      $region37: #{grad_desc_forward.2} parent=11 // pred_check
        %p456 = pneg %p345
      $region38: #{grad_desc_forward.2} parent=11 // pred_check_branch
        %458 = sbr.rel (%p456) target = $region40
      $region39: #{grad_desc_forward.2} parent=11 // pred_region
        _
      $region40: #{grad_desc_forward.2} parent=11 // pred_fallthru
        _
    $region12: #{grad_desc_forward.2} parent=5 // pred_fallthru
      _
    %p459 = scmp.lt.s32.totalorder %s22, 8
    // Predicated region
    $region41: #{grad_desc_forward.2} parent=5 // pred_check
      %p460 = pneg %p459
    $region42: #{grad_desc_forward.2} parent=5 // pred_check_branch
      %462 = sbr.rel (%p460) target = $region44
    $region43: #{grad_desc_forward.2} parent=5 // pred_region
      // Predicated region
      $region45: #{grad_desc_forward.2} parent=43 // pred_check
        %p463 = pneg %p54
      $region46: #{grad_desc_forward.2} parent=43 // pred_check_branch
        %465 = sbr.rel (%p463) target = $region48
      $region47: #{grad_desc_forward.2} parent=43 // pred_region
        %p466 = scmp.lt.s32.totalorder %s29, 1
        %s467 = scalar_select %p466, %s29, 1
        %s468 = smul.addr %s467, 2
        %s469 = smul.addr %s468, 8
        %s470 = scalar_lea.vmem %s0, %s469
      $region48: #{grad_desc_forward.2} parent=43 // pred_fallthru
        _
      // Predicated region
      $region49: #{grad_desc_forward.2} parent=43 // pred_check
        %p471 = pneg %p80
      $region50: #{grad_desc_forward.2} parent=43 // pred_check_branch
        %473 = sbr.rel (%p471) target = $region52
      $region51: #{grad_desc_forward.2} parent=43 // pred_region
        %p474 = scmp.lt.s32.totalorder %s29, 1
        %s475 = scalar_select %p474, %s29, 1
        %s476 = smul.addr %s475, 2
        %s477 = smul.addr %s476, 8
        %s478 = scalar_lea.vmem %s1, %s477
      $region52: #{grad_desc_forward.2} parent=43 // pred_fallthru
        _
      // Predicated region
      $region53: #{grad_desc_forward.2} parent=43 // pred_check
        %p479 = pneg %p108
      $region54: #{grad_desc_forward.2} parent=43 // pred_check_branch
        %481 = sbr.rel (%p479) target = $region56
      $region55: #{grad_desc_forward.2} parent=43 // pred_region
        %p482 = scmp.lt.s32.totalorder %s29, 1
        %s483 = scalar_select %p482, %s29, 1
        %p484 = scmp.lt.s32.totalorder %s30, 3
        %s485 = scalar_select %p484, %s30, 3
        %s486 = smul.addr %s485, 2
        %s487 = smul.addr %s483, 8
        %s488 = sadd.s32 %s486, %s487
        %s489 = smul.addr %s488, 8
        %s490 = scalar_lea.vmem %s2, %s489
      $region56: #{grad_desc_forward.2} parent=43 // pred_fallthru
        _
      // Predicated region
      $region57: #{grad_desc_forward.2} parent=43 // pred_check
        %p491 = pneg %p136
      $region58: #{grad_desc_forward.2} parent=43 // pred_check_branch
        %493 = sbr.rel (%p491) target = $region60
      $region59: #{grad_desc_forward.2} parent=43 // pred_region
        %p494 = scmp.lt.s32.totalorder %s29, 1
        %s495 = scalar_select %p494, %s29, 1
        %p496 = scmp.lt.s32.totalorder %s30, 3
        %s497 = scalar_select %p496, %s30, 3
        %s498 = smul.addr %s497, 2
        %s499 = smul.addr %s495, 8
        %s500 = sadd.s32 %s498, %s499
        %s501 = smul.addr %s500, 8
        %s502 = scalar_lea.vmem %s3, %s501
      $region60: #{grad_desc_forward.2} parent=43 // pred_fallthru
        _
      // Predicated region
      $region61: #{grad_desc_forward.2} parent=43 // pred_check
        %p503 = pneg %p164
      $region62: #{grad_desc_forward.2} parent=43 // pred_check_branch
        %505 = sbr.rel (%p503) target = $region64
      $region63: #{grad_desc_forward.2} parent=43 // pred_region
        %p506 = scmp.lt.s32.totalorder %s29, 1
        %s507 = scalar_select %p506, %s29, 1
        %p508 = scmp.lt.s32.totalorder %s30, 3
        %s509 = scalar_select %p508, %s30, 3
        %s510 = smul.addr %s509, 2
        %s511 = smul.addr %s507, 8
        %s512 = sadd.s32 %s510, %s511
        %s513 = smul.addr %s512, 8
        %s514 = scalar_lea.vmem %s4, %s513
      $region64: #{grad_desc_forward.2} parent=43 // pred_fallthru
        _
      // Predicated region
      $region65: #{grad_desc_forward.2} parent=43 // pred_check
        %p515 = pneg %p192
      $region66: #{grad_desc_forward.2} parent=43 // pred_check_branch
        %517 = sbr.rel (%p515) target = $region68
      $region67: #{grad_desc_forward.2} parent=43 // pred_region
        %p518 = scmp.lt.s32.totalorder %s29, 1
        %s519 = scalar_select %p518, %s29, 1
        %p520 = scmp.lt.s32.totalorder %s30, 3
        %s521 = scalar_select %p520, %s30, 3
        %s522 = smul.addr %s521, 2
        %s523 = smul.addr %s519, 8
        %s524 = sadd.s32 %s522, %s523
        %s525 = smul.addr %s524, 8
        %s526 = scalar_lea.vmem %s5, %s525
      $region68: #{grad_desc_forward.2} parent=43 // pred_fallthru
        _
    $region44: #{grad_desc_forward.2} parent=5 // pred_fallthru
      _
    %p527 = scmp.le.s32.totalorder 1, %s22
    %p528 = scmp.lt.s32.totalorder %s22, 9
    %p529 = pnand %p527, %p528
    %p530 = pneg %p529
    // Predicated region
    $region69: #{grad_desc_forward.2} parent=5 // pred_check
      _
    $region70: #{grad_desc_forward.2} parent=5 // pred_check_branch
      %532 = sbr.rel (%p529) target = $region72
    $region71: #{grad_desc_forward.2} parent=5 // pred_region
      %s533 = ssub.s32 %s22, 1
      %p534 = scmp.lt.s32.totalorder %s31, 1
      %s535 = scalar_select %p534, %s31, 1
      %s536 = smul.addr %s535, 2
      %s537 = smul.addr %s536, 8
      %s538 = scalar_lea.vmem %s0, %s537
      %p539 = pneg %p60
      %p540 = pneg %p57
      %p541 = scmp.lt.s32.totalorder %s31, 1
      %s542 = scalar_select %p541, %s31, 1
      %s543 = smul.addr %s542, 2
      %s544 = smul.addr %s543, 8
      %s545 = scalar_lea.vmem %s1, %s544
      %p546 = pneg %p86
      %p547 = pneg %p83
      %p548 = scmp.lt.s32.totalorder %s31, 1
      %s549 = scalar_select %p548, %s31, 1
      %p550 = scmp.lt.s32.totalorder %s32, 3
      %s551 = scalar_select %p550, %s32, 3
      %s552 = smul.addr %s551, 2
      %s553 = smul.addr %s549, 8
      %s554 = sadd.s32 %s552, %s553
      %s555 = smul.addr %s554, 8
      %s556 = scalar_lea.vmem %s2, %s555
      %p557 = pneg %p114
      %p558 = pneg %p111
      %p559 = scmp.lt.s32.totalorder %s31, 1
      %s560 = scalar_select %p559, %s31, 1
      %p561 = scmp.lt.s32.totalorder %s32, 3
      %s562 = scalar_select %p561, %s32, 3
      %s563 = smul.addr %s562, 2
      %s564 = smul.addr %s560, 8
      %s565 = sadd.s32 %s563, %s564
      %s566 = smul.addr %s565, 8
      %s567 = scalar_lea.vmem %s3, %s566
      %p568 = pneg %p142
      %p569 = pneg %p139
      %p570 = scmp.lt.s32.totalorder %s31, 1
      %s571 = scalar_select %p570, %s31, 1
      %p572 = scmp.lt.s32.totalorder %s32, 3
      %s573 = scalar_select %p572, %s32, 3
      %s574 = smul.addr %s573, 2
      %s575 = smul.addr %s571, 8
      %s576 = sadd.s32 %s574, %s575
      %s577 = smul.addr %s576, 8
      %s578 = scalar_lea.vmem %s4, %s577
      %p579 = pneg %p170
      %p580 = pneg %p167
      %p581 = scmp.lt.s32.totalorder %s31, 1
      %s582 = scalar_select %p581, %s31, 1
      %p583 = scmp.lt.s32.totalorder %s32, 3
      %s584 = scalar_select %p583, %s32, 3
      %s585 = smul.addr %s584, 2
      %s586 = smul.addr %s582, 8
      %s587 = sadd.s32 %s585, %s586
      %s588 = smul.addr %s587, 8
      %s589 = scalar_lea.vmem %s5, %s588
      %p590 = pneg %p198
      %p591 = pneg %p195
      %p592 = pneg %p219
      %p593 = pneg %p216
      %p594 = pneg %p240
      %p595 = pneg %p237
      %p596 = pneg %p261
      %p597 = pneg %p258
      %p598 = pneg %p282
      %p599 = pneg %p279
      %p600 = pneg %p303
      %p601 = pneg %p300
      %p602 = pneg %p324
      %p603 = pneg %p321
      %p604 = pneg %p345
      %p605 = pneg %p342
      %p606 = pneg %p371
      %p607 = pneg %p368
      %p608 = scmp.lt.s32.totalorder %s31, 1
      %s609 = scalar_select %p608, %s31, 1
      %s610 = smul.addr %s609, 2
      %s611 = smul.addr %s610, 8
      %s612 = scalar_lea.vmem %s13, %s611
      %p613 = pneg %p397
      %p614 = pneg %p394
      %p615 = scmp.lt.s32.totalorder %s31, 1
      %s616 = scalar_select %p615, %s31, 1
      %s617 = smul.addr %s616, 2
      %s618 = smul.addr %s617, 8
      %s619 = scalar_lea.vmem %s14, %s618
      %p620 = pneg %p423
      %p621 = pneg %p420
      %p622 = scmp.lt.s32.totalorder %s31, 1
      %s623 = scalar_select %p622, %s31, 1
      %s624 = scalar_lea.vmem %s15, %s623
      %p625 = scmp.lt.s32.totalorder %s31, 1
      %s626 = scalar_select %p625, %s31, 1
      %s627 = smul.addr %s626, 2
      %s628 = smul.addr %s627, 8
      %s629 = scalar_lea.vmem %s0, %s628
      %p630 = scmp.lt.s32.totalorder %s31, 1
      %s631 = scalar_select %p630, %s31, 1
      %s632 = smul.addr %s631, 2
      %s633 = smul.addr %s632, 8
      %s634 = scalar_lea.vmem %s1, %s633
      %p635 = scmp.lt.s32.totalorder %s31, 1
      %s636 = scalar_select %p635, %s31, 1
      %p637 = scmp.lt.s32.totalorder %s32, 3
      %s638 = scalar_select %p637, %s32, 3
      %s639 = smul.addr %s638, 2
      %s640 = smul.addr %s636, 8
      %s641 = sadd.s32 %s639, %s640
      %s642 = smul.addr %s641, 8
      %s643 = scalar_lea.vmem %s2, %s642
      %p644 = scmp.lt.s32.totalorder %s31, 1
      %s645 = scalar_select %p644, %s31, 1
      %p646 = scmp.lt.s32.totalorder %s32, 3
      %s647 = scalar_select %p646, %s32, 3
      %s648 = smul.addr %s647, 2
      %s649 = smul.addr %s645, 8
      %s650 = sadd.s32 %s648, %s649
      %s651 = smul.addr %s650, 8
      %s652 = scalar_lea.vmem %s3, %s651
      %p653 = scmp.lt.s32.totalorder %s31, 1
      %s654 = scalar_select %p653, %s31, 1
      %p655 = scmp.lt.s32.totalorder %s32, 3
      %s656 = scalar_select %p655, %s32, 3
      %s657 = smul.addr %s656, 2
      %s658 = smul.addr %s654, 8
      %s659 = sadd.s32 %s657, %s658
      %s660 = smul.addr %s659, 8
      %s661 = scalar_lea.vmem %s4, %s660
      %p662 = scmp.lt.s32.totalorder %s31, 1
      %s663 = scalar_select %p662, %s31, 1
      %p664 = scmp.lt.s32.totalorder %s32, 3
      %s665 = scalar_select %p664, %s32, 3
      %s666 = smul.addr %s665, 2
      %s667 = smul.addr %s663, 8
      %s668 = sadd.s32 %s666, %s667
      %s669 = smul.addr %s668, 8
      %s670 = scalar_lea.vmem %s5, %s669
      %p671 = scmp.lt.s32.totalorder %s31, 1
      %s672 = scalar_select %p671, %s31, 1
      %s673 = smul.addr %s672, 2
      %s674 = smul.addr %s673, 8
      %s675 = scalar_lea.vmem %s13, %s674
      %p676 = scmp.lt.s32.totalorder %s31, 1
      %s677 = scalar_select %p676, %s31, 1
      %s678 = smul.addr %s677, 2
      %s679 = smul.addr %s678, 8
      %s680 = scalar_lea.vmem %s14, %s679
      %p681 = scmp.lt.s32.totalorder %s31, 1
      %s682 = scalar_select %p681, %s31, 1
      %s683 = scalar_lea.vmem %s15, %s682
      %v684 = vld [vmem:[%s629] sm:$0xff]
      %v685 = vld [vmem:[%s629 + $0x8] sm:$0xff]
      %v686 = vld [vmem:[%s634] sm:$0xff]
      %v687 = vld [vmem:[%s634 + $0x8] sm:$0xff]
      %v688 = vld [vmem:[%s643] sm:$0xff]
      %v689 = vld [vmem:[%s643 + $0x8] sm:$0xff]
      %v690 = vld [vmem:[%s652] sm:$0xff]
      %v691 = vld [vmem:[%s652 + $0x8] sm:$0xff]
      %v692 = vld [vmem:[%s6] sm:$0xff]
      %v693 = vld [vmem:[%s6 + $0x8] sm:$0xff]
      %v694 = vmul.f32 %v684, %v688
      %v695 = vmul.f32 %v685, %v689
      %v696 = vmul.f32 %v686, %v690
      %v697 = vmul.f32 %v687, %v691
      %v698 = vsub.f32 %v694, %v696
      %v699 = vsub.f32 %v695, %v697
      %v700 = vmul.f32 %v684, %v690
      %v701 = vmul.f32 %v685, %v691
      %v702 = vmul.f32 %v686, %v688
      %v703 = vmul.f32 %v687, %v689
      %v704 = vadd.f32 %v700, %v702
      %v705 = vadd.f32 %v701, %v703
      %v706 = vld [vmem:[%s7] sm:$0xff]
      %v707 = vld [vmem:[%s7 + $0x8] sm:$0xff]
      %v708 = vld [vmem:[%s8] sm:$0xff]
      %v709 = vld [vmem:[%s8 + $0x8] sm:$0xff]
      %v710 = vld [vmem:[%s9] sm:$0xff]
      %v711 = vld [vmem:[%s9 + $0x8] sm:$0xff]
      %v712 = vadd.f32 %v698, %v704
      %v713 = vadd.f32 %v699, %v705
      %vm714 = vcmask 130048
      %v716 = vsel %vm714, %v706, 0
      %v719 = vsel %vm714, %v707, 0
      %721 = vmatpush.msra.mxu0 0.0
      %722 = vmatpush.msra.mxu0 0.0
      %723 = vmatpush.msra.mxu0 0.0
      %724 = vmatpush.msra.mxu0 0.0
      %725 = vmatpush.msra.mxu0 0.0
      %726 = vmatpush.msra.mxu0 0.0
      %727 = vmatpush.msra.mxu0 0.0
      %728 = vmatpush.msra.mxu0 0.0
      %729 = vmatpush.msra.mxu0 0.0
      %730 = vmatpush.msra.mxu0 0.0
      %731 = vmatpush.msra.mxu0 0.0
      %732 = vmatpush.msra.mxu0 0.0
      %733 = vmatpush.msra.mxu0 0.0
      %734 = vmatpush.msra.mxu0 0.0
      %735 = vmatpush.msra.mxu0 %v713
      %736 = vmatpush.msra.mxu0 %v712
      %737 = vmatmul.f32.gmra.mxu0 %v716
      %v738 = vpop.f32.mrf.mxu0
      %v739 = vadd.f32 0.0, %v738
      %740 = vmatmul.f32.gmra.mxu0 %v719
      %v741 = vpop.f32.mrf.mxu0
      %v742 = vadd.f32 0.0, %v741
      %743 = vdwg.mxu0
      %v745 = vsel %vm714, %v708, 0
      %v748 = vsel %vm714, %v709, 0
      %750 = vmatpush.msra.mxu0 0.0
      %751 = vmatpush.msra.mxu0 0.0
      %752 = vmatpush.msra.mxu0 0.0
      %753 = vmatpush.msra.mxu0 0.0
      %754 = vmatpush.msra.mxu0 0.0
      %755 = vmatpush.msra.mxu0 0.0
      %756 = vmatpush.msra.mxu0 0.0
      %757 = vmatpush.msra.mxu0 0.0
      %758 = vmatpush.msra.mxu0 0.0
      %759 = vmatpush.msra.mxu0 0.0
      %760 = vmatpush.msra.mxu0 0.0
      %761 = vmatpush.msra.mxu0 0.0
      %762 = vmatpush.msra.mxu0 0.0
      %763 = vmatpush.msra.mxu0 0.0
      %764 = vmatpush.msra.mxu0 %v705
      %765 = vmatpush.msra.mxu0 %v704
      %766 = vmatmul.f32.gmra.mxu0 %v745
      %v767 = vpop.f32.mrf.mxu0
      %v768 = vadd.f32 0.0, %v767
      %769 = vmatmul.f32.gmra.mxu0 %v748
      %v770 = vpop.f32.mrf.mxu0
      %v771 = vadd.f32 0.0, %v770
      %772 = vdwg.mxu0
      %v774 = vsel %vm714, %v710, 0
      %v777 = vsel %vm714, %v711, 0
      %779 = vmatpush.msra.mxu0 0.0
      %780 = vmatpush.msra.mxu0 0.0
      %781 = vmatpush.msra.mxu0 0.0
      %782 = vmatpush.msra.mxu0 0.0
      %783 = vmatpush.msra.mxu0 0.0
      %784 = vmatpush.msra.mxu0 0.0
      %785 = vmatpush.msra.mxu0 0.0
      %786 = vmatpush.msra.mxu0 0.0
      %787 = vmatpush.msra.mxu0 0.0
      %788 = vmatpush.msra.mxu0 0.0
      %789 = vmatpush.msra.mxu0 0.0
      %790 = vmatpush.msra.mxu0 0.0
      %791 = vmatpush.msra.mxu0 0.0
      %792 = vmatpush.msra.mxu0 0.0
      %793 = vmatpush.msra.mxu0 %v699
      %794 = vmatpush.msra.mxu0 %v698
      %795 = vmatmul.f32.gmra.mxu0 %v774
      %v796 = vpop.f32.mrf.mxu0
      %v797 = vadd.f32 0.0, %v796
      %798 = vmatmul.f32.gmra.mxu0 %v777
      %v799 = vpop.f32.mrf.mxu0
      %v800 = vadd.f32 0.0, %v799
      %801 = vdwg.mxu0
      %v802 = vsub.f32 %v739, %v768
      %v803 = vsub.f32 %v742, %v771
      %v804 = vadd.f32 %v739, %v797
      %v805 = vadd.f32 %v742, %v800
      %v806 = vld [vmem:[%s10] sm:$0xff]
      %v807 = vld [vmem:[%s10 + $0x8] sm:$0xff]
      %v808 = vld [vmem:[%s11] sm:$0xff]
      %v809 = vld [vmem:[%s11 + $0x8] sm:$0xff]
      %v810 = vld [vmem:[%s12] sm:$0xff]
      %v811 = vld [vmem:[%s12 + $0x8] sm:$0xff]
      %v812 = vadd.f32 %v802, %v804
      %v813 = vadd.f32 %v803, %v805
      %v815 = vsel %vm714, %v812, 0
      %v818 = vsel %vm714, %v813, 0
      %820 = vmatpush.msra.mxu0 0.0
      %821 = vmatpush.msra.mxu0 0.0
      %822 = vmatpush.msra.mxu0 0.0
      %823 = vmatpush.msra.mxu0 0.0
      %824 = vmatpush.msra.mxu0 0.0
      %825 = vmatpush.msra.mxu0 0.0
      %826 = vmatpush.msra.mxu0 0.0
      %827 = vmatpush.msra.mxu0 0.0
      %828 = vmatpush.msra.mxu0 0.0
      %829 = vmatpush.msra.mxu0 0.0
      %830 = vmatpush.msra.mxu0 0.0
      %831 = vmatpush.msra.mxu0 0.0
      %832 = vmatpush.msra.mxu0 0.0
      %833 = vmatpush.msra.mxu0 0.0
      %834 = vmatpush.msra.mxu0 %v807
      %835 = vmatpush.msra.mxu0 %v806
      %836 = vmatmul.f32.gmra.mxu0 %v815
      %v837 = vpop.f32.mrf.mxu0
      %v838 = vadd.f32 0.0, %v837
      %839 = vmatmul.f32.gmra.mxu0 %v818
      %v840 = vpop.f32.mrf.mxu0
      %v841 = vadd.f32 0.0, %v840
      %842 = vdwg.mxu0
      %v844 = vsel %vm714, %v804, 0
      %v847 = vsel %vm714, %v805, 0
      %849 = vmatpush.msra.mxu0 0.0
      %850 = vmatpush.msra.mxu0 0.0
      %851 = vmatpush.msra.mxu0 0.0
      %852 = vmatpush.msra.mxu0 0.0
      %853 = vmatpush.msra.mxu0 0.0
      %854 = vmatpush.msra.mxu0 0.0
      %855 = vmatpush.msra.mxu0 0.0
      %856 = vmatpush.msra.mxu0 0.0
      %857 = vmatpush.msra.mxu0 0.0
      %858 = vmatpush.msra.mxu0 0.0
      %859 = vmatpush.msra.mxu0 0.0
      %860 = vmatpush.msra.mxu0 0.0
      %861 = vmatpush.msra.mxu0 0.0
      %862 = vmatpush.msra.mxu0 0.0
      %863 = vmatpush.msra.mxu0 %v809
      %864 = vmatpush.msra.mxu0 %v808
      %865 = vmatmul.f32.gmra.mxu0 %v844
      %v866 = vpop.f32.mrf.mxu0
      %v867 = vadd.f32 0.0, %v866
      %868 = vmatmul.f32.gmra.mxu0 %v847
      %v869 = vpop.f32.mrf.mxu0
      %v870 = vadd.f32 0.0, %v869
      %871 = vdwg.mxu0
      %v873 = vsel %vm714, %v802, 0
      %v876 = vsel %vm714, %v803, 0
      %878 = vmatpush.msra.mxu0 0.0
      %879 = vmatpush.msra.mxu0 0.0
      %880 = vmatpush.msra.mxu0 0.0
      %881 = vmatpush.msra.mxu0 0.0
      %882 = vmatpush.msra.mxu0 0.0
      %883 = vmatpush.msra.mxu0 0.0
      %884 = vmatpush.msra.mxu0 0.0
      %885 = vmatpush.msra.mxu0 0.0
      %886 = vmatpush.msra.mxu0 0.0
      %887 = vmatpush.msra.mxu0 0.0
      %888 = vmatpush.msra.mxu0 0.0
      %889 = vmatpush.msra.mxu0 0.0
      %890 = vmatpush.msra.mxu0 0.0
      %891 = vmatpush.msra.mxu0 0.0
      %892 = vmatpush.msra.mxu0 %v811
      %893 = vmatpush.msra.mxu0 %v810
      %894 = vmatmul.f32.gmra.mxu0 %v873
      %v895 = vpop.f32.mrf.mxu0
      %v896 = vadd.f32 0.0, %v895
      %897 = vmatmul.f32.gmra.mxu0 %v876
      %v898 = vpop.f32.mrf.mxu0
      %v899 = vadd.f32 0.0, %v898
      %900 = vdwg.mxu0
      %v901 = vsub.f32 %v838, %v867
      %v902 = vsub.f32 %v841, %v870
      %v903 = vadd.f32 %v838, %v896
      %v904 = vadd.f32 %v841, %v899
      %v905 = vmul.f32 %v901, %v692
      %v906 = vmul.f32 %v902, %v693
      %v907 = vld [vmem:[%s661] sm:$0xff]
      %v908 = vld [vmem:[%s661 + $0x8] sm:$0xff]
      %v909 = vsub.f32 %v905, %v907
      %v910 = vsub.f32 %v906, %v908
      %v911 = vmul.f32 %v903, %v692
      %v912 = vmul.f32 %v904, %v693
      %v913 = vld [vmem:[%s670] sm:$0xff]
      %v914 = vld [vmem:[%s670 + $0x8] sm:$0xff]
      %v915 = vsub.f32 %v911, %v913
      %v916 = vsub.f32 %v912, %v914
      %v917 = vmul.f32 %v909, %v909
      %v918 = vmul.f32 %v910, %v910
      %v919 = vmul.f32 %v915, %v915
      %v920 = vmul.f32 %v916, %v916
      %v921 = vadd.f32 %v917, %v919
      %v922 = vadd.f32 %v918, %v920
      %v923 = vsel %vm714, %v921, 0.0
      %924 = vadd.xlane.f32.xlu0 %v923
      %v925 = vpop.xlane.xlu0 %924
      %v926 = vsel %vm714, %v922, 0.0
      %927 = vadd.xlane.f32.xlu0 %v926
      %v928 = vpop.xlane.xlu0 %927
      %v929 = vadd.f32 %v925, %v928
      %v930 = vrot.slane %v929, 4
      %v931 = vadd.f32 %v929, %v930
      %v932 = vrot.slane %v931, 2
      %v933 = vadd.f32 %v931, %v932
      %v934 = vrot.slane %v933, 1
      %v935 = vadd.f32 %v933, %v934
      %v936 = vmul.f32 %v909, %v692
      %v937 = vmul.f32 %v910, %v693
      %v938 = vmul.f32 %v915, %v692
      %v939 = vmul.f32 %v916, %v693
      %v940 = vadd.f32 %v936, %v938
      %v941 = vadd.f32 %v937, %v939
      %942 = vmatpush.msra.mxu0 0.0
      %943 = vmatpush.msra.mxu0 0.0
      %944 = vmatpush.msra.mxu0 0.0
      %945 = vmatpush.msra.mxu0 0.0
      %946 = vmatpush.msra.mxu0 0.0
      %947 = vmatpush.msra.mxu0 0.0
      %948 = vmatpush.msra.mxu0 0.0
      %949 = vmatpush.msra.mxu0 0.0
      %950 = vmatpush.msra.mxu0 0.0
      %951 = vmatpush.msra.mxu0 0.0
      %952 = vmatpush.msra.mxu0 0.0
      %953 = vmatpush.msra.mxu0 0.0
      %954 = vmatpush.msra.mxu0 0.0
      %955 = vmatpush.msra.mxu0 0.0
      %956 = vmatpush.msra.mxu0 %v941
      %957 = vmatpush.msra.mxu0 %v940
      %958 = vmatmul.f32.gmra.mxu0 %v716
      %v959 = vpop.f32.mrf.mxu0
      %v960 = vadd.f32 0.0, %v959
      %961 = vmatmul.f32.gmra.mxu0 %v719
      %v962 = vpop.f32.mrf.mxu0
      %v963 = vadd.f32 0.0, %v962
      %964 = vdwg.mxu0
      %965 = vmatpush.msra.mxu0 0.0
      %966 = vmatpush.msra.mxu0 0.0
      %967 = vmatpush.msra.mxu0 0.0
      %968 = vmatpush.msra.mxu0 0.0
      %969 = vmatpush.msra.mxu0 0.0
      %970 = vmatpush.msra.mxu0 0.0
      %971 = vmatpush.msra.mxu0 0.0
      %972 = vmatpush.msra.mxu0 0.0
      %973 = vmatpush.msra.mxu0 0.0
      %974 = vmatpush.msra.mxu0 0.0
      %975 = vmatpush.msra.mxu0 0.0
      %976 = vmatpush.msra.mxu0 0.0
      %977 = vmatpush.msra.mxu0 0.0
      %978 = vmatpush.msra.mxu0 0.0
      %979 = vmatpush.msra.mxu0 %v939
      %980 = vmatpush.msra.mxu0 %v938
      %981 = vmatmul.f32.gmra.mxu0 %v774
      %v982 = vpop.f32.mrf.mxu0
      %v983 = vadd.f32 0.0, %v982
      %984 = vmatmul.f32.gmra.mxu0 %v777
      %v985 = vpop.f32.mrf.mxu0
      %v986 = vadd.f32 0.0, %v985
      %987 = vdwg.mxu0
      %988 = vmatpush.msra.mxu0 0.0
      %989 = vmatpush.msra.mxu0 0.0
      %990 = vmatpush.msra.mxu0 0.0
      %991 = vmatpush.msra.mxu0 0.0
      %992 = vmatpush.msra.mxu0 0.0
      %993 = vmatpush.msra.mxu0 0.0
      %994 = vmatpush.msra.mxu0 0.0
      %995 = vmatpush.msra.mxu0 0.0
      %996 = vmatpush.msra.mxu0 0.0
      %997 = vmatpush.msra.mxu0 0.0
      %998 = vmatpush.msra.mxu0 0.0
      %999 = vmatpush.msra.mxu0 0.0
      %1000 = vmatpush.msra.mxu0 0.0
      %1001 = vmatpush.msra.mxu0 0.0
      %1002 = vmatpush.msra.mxu0 %v937
      %1003 = vmatpush.msra.mxu0 %v936
      %1004 = vmatmul.f32.gmra.mxu0 %v745
      %v1005 = vpop.f32.mrf.mxu0
      %v1006 = vadd.f32 0.0, %v1005
      %1007 = vmatmul.f32.gmra.mxu0 %v748
      %v1008 = vpop.f32.mrf.mxu0
      %v1009 = vadd.f32 0.0, %v1008
      %1010 = vdwg.mxu0
      %v1011 = vadd.f32 %v960, %v983
      %v1012 = vadd.f32 %v963, %v986
      %v1013 = vsub.f32 %v960, %v1006
      %v1014 = vsub.f32 %v963, %v1009
      %v1015 = vadd.f32 %v1011, %v1013
      %v1016 = vadd.f32 %v1012, %v1014
      %v1018 = vsel %vm714, %v1015, 0
      %v1021 = vsel %vm714, %v1016, 0
      %1023 = vmatpush.msra.mxu0 0.0
      %1024 = vmatpush.msra.mxu0 0.0
      %1025 = vmatpush.msra.mxu0 0.0
      %1026 = vmatpush.msra.mxu0 0.0
      %1027 = vmatpush.msra.mxu0 0.0
      %1028 = vmatpush.msra.mxu0 0.0
      %1029 = vmatpush.msra.mxu0 0.0
      %1030 = vmatpush.msra.mxu0 0.0
      %1031 = vmatpush.msra.mxu0 0.0
      %1032 = vmatpush.msra.mxu0 0.0
      %1033 = vmatpush.msra.mxu0 0.0
      %1034 = vmatpush.msra.mxu0 0.0
      %1035 = vmatpush.msra.mxu0 0.0
      %1036 = vmatpush.msra.mxu0 0.0
      %1037 = vmatpush.msra.mxu0 %v807
      %1038 = vmatpush.msra.mxu0 %v806
      %1039 = vmatmul.f32.gmra.mxu0 %v1018
      %v1040 = vpop.f32.mrf.mxu0
      %v1041 = vadd.f32 0.0, %v1040
      %1042 = vmatmul.f32.gmra.mxu0 %v1021
      %v1043 = vpop.f32.mrf.mxu0
      %v1044 = vadd.f32 0.0, %v1043
      %1045 = vdwg.mxu0
      %v1047 = vsel %vm714, %v1013, 0
      %v1050 = vsel %vm714, %v1014, 0
      %1052 = vmatpush.msra.mxu0 0.0
      %1053 = vmatpush.msra.mxu0 0.0
      %1054 = vmatpush.msra.mxu0 0.0
      %1055 = vmatpush.msra.mxu0 0.0
      %1056 = vmatpush.msra.mxu0 0.0
      %1057 = vmatpush.msra.mxu0 0.0
      %1058 = vmatpush.msra.mxu0 0.0
      %1059 = vmatpush.msra.mxu0 0.0
      %1060 = vmatpush.msra.mxu0 0.0
      %1061 = vmatpush.msra.mxu0 0.0
      %1062 = vmatpush.msra.mxu0 0.0
      %1063 = vmatpush.msra.mxu0 0.0
      %1064 = vmatpush.msra.mxu0 0.0
      %1065 = vmatpush.msra.mxu0 0.0
      %1066 = vmatpush.msra.mxu0 %v811
      %1067 = vmatpush.msra.mxu0 %v810
      %1068 = vmatmul.f32.gmra.mxu0 %v1047
      %v1069 = vpop.f32.mrf.mxu0
      %v1070 = vadd.f32 0.0, %v1069
      %1071 = vmatmul.f32.gmra.mxu0 %v1050
      %v1072 = vpop.f32.mrf.mxu0
      %v1073 = vadd.f32 0.0, %v1072
      %1074 = vdwg.mxu0
      %v1076 = vsel %vm714, %v1011, 0
      %v1079 = vsel %vm714, %v1012, 0
      %1081 = vmatpush.msra.mxu0 0.0
      %1082 = vmatpush.msra.mxu0 0.0
      %1083 = vmatpush.msra.mxu0 0.0
      %1084 = vmatpush.msra.mxu0 0.0
      %1085 = vmatpush.msra.mxu0 0.0
      %1086 = vmatpush.msra.mxu0 0.0
      %1087 = vmatpush.msra.mxu0 0.0
      %1088 = vmatpush.msra.mxu0 0.0
      %1089 = vmatpush.msra.mxu0 0.0
      %1090 = vmatpush.msra.mxu0 0.0
      %1091 = vmatpush.msra.mxu0 0.0
      %1092 = vmatpush.msra.mxu0 0.0
      %1093 = vmatpush.msra.mxu0 0.0
      %1094 = vmatpush.msra.mxu0 0.0
      %1095 = vmatpush.msra.mxu0 %v809
      %1096 = vmatpush.msra.mxu0 %v808
      %1097 = vmatmul.f32.gmra.mxu0 %v1076
      %v1098 = vpop.f32.mrf.mxu0
      %v1099 = vadd.f32 0.0, %v1098
      %1100 = vmatmul.f32.gmra.mxu0 %v1079
      %v1101 = vpop.f32.mrf.mxu0
      %v1102 = vadd.f32 0.0, %v1101
      %1103 = vdwg.mxu0
      %v1104 = vadd.f32 %v1041, %v1070
      %v1105 = vadd.f32 %v1044, %v1073
      %v1106 = vsub.f32 %v1041, %v1099
      %v1107 = vsub.f32 %v1044, %v1102
      %v1108 = vmul.f32 %v688, %v1104
      %v1109 = vmul.f32 %v689, %v1105
      %v1110 = vmul.f32 %v690, %v1106
      %v1111 = vmul.f32 %v691, %v1107
      %v1112 = vadd.f32 %v1108, %v1110
      %v1113 = vadd.f32 %v1109, %v1111
      %v1114 = vmul.f32 %v688, %v1106
      %v1115 = vmul.f32 %v689, %v1107
      %v1116 = vmul.f32 %v690, %v1104
      %v1117 = vmul.f32 %v691, %v1105
      %v1118 = vsub.f32 %v1114, %v1116
      %v1119 = vsub.f32 %v1115, %v1117
      %p1120 = scmp.eq.s32.totalorder %s32, 0
      // Predicated region
      $region73: #{grad_desc_forward.2} parent=71 // pred_check
        %p1121 = pneg %p1120
      $region74: #{grad_desc_forward.2} parent=71 // pred_check_branch
        %1123 = sbr.rel (%p1121) target = $region76
      $region75: #{grad_desc_forward.2} parent=71 // pred_region
        %1124 = vst.msk [vmem:[%s675] sm:$0xff] %vm714, %v1112
        %1125 = vst.msk [vmem:[%s675 + $0x8] sm:$0xff] %vm714, %v1113
        %1126 = vst.msk [vmem:[%s680] sm:$0xff] %vm714, %v1118
        %1127 = vst.msk [vmem:[%s680 + $0x8] sm:$0xff] %vm714, %v1119
        %vm1128 = vcmask 0
        %1129 = vst.msk [vmem:[%s683] sm:$0x1] %vm1128, %v935
      $region76: #{grad_desc_forward.2} parent=71 // pred_fallthru
        _
      %p1130 = scmp.gt.s32.totalorder %s32, 0
      // Predicated region
      $region77: #{grad_desc_forward.2} parent=71 // pred_check
        %p1131 = pneg %p1130
      $region78: #{grad_desc_forward.2} parent=71 // pred_check_branch
        %1133 = sbr.rel (%p1131) target = $region80
      $region79: #{grad_desc_forward.2} parent=71 // pred_region
        %v1134 = vld [vmem:[%s675] sm:$0xff]
        %v1135 = vld [vmem:[%s675 + $0x8] sm:$0xff]
        %v1136 = vadd.f32 %v1134, %v1112
        %v1137 = vadd.f32 %v1135, %v1113
        %1138 = vst.msk [vmem:[%s675] sm:$0xff] %vm714, %v1136
        %1139 = vst.msk [vmem:[%s675 + $0x8] sm:$0xff] %vm714, %v1137
        %v1140 = vld [vmem:[%s680] sm:$0xff]
        %v1141 = vld [vmem:[%s680 + $0x8] sm:$0xff]
        %v1142 = vadd.f32 %v1140, %v1118
        %v1143 = vadd.f32 %v1141, %v1119
        %1144 = vst.msk [vmem:[%s680] sm:$0xff] %vm714, %v1142
        %1145 = vst.msk [vmem:[%s680 + $0x8] sm:$0xff] %vm714, %v1143
        %v1146 = vld [vmem:[%s683] sm:$0x1]
        %v1147 = vadd.f32 %v1146, %v935
        %vm1148 = vcmask 0
        %1149 = vst.msk [vmem:[%s683] sm:$0x1] %vm1148, %v1147
      $region80: #{grad_desc_forward.2} parent=71 // pred_fallthru
        _
      %p1150 = scmp.lt.s32.totalorder %s31, 1
      %s1151 = scalar_select %p1150, %s31, 1
      %s1152 = smul.addr %s1151, 2
      %s1153 = smul.addr %s1152, 8
      %s1154 = scalar_lea.vmem %s13, %s1153
      %p1155 = scmp.lt.s32.totalorder %s31, 1
      %s1156 = scalar_select %p1155, %s31, 1
      %s1157 = smul.addr %s1156, 2
      %s1158 = smul.addr %s1157, 8
      %s1159 = scalar_lea.vmem %s14, %s1158
      %p1160 = scmp.lt.s32.totalorder %s31, 1
      %s1161 = scalar_select %p1160, %s31, 1
      %s1162 = scalar_lea.vmem %s15, %s1161
      // Predicated region
      $region81: #{grad_desc_forward.2} parent=71 // pred_check
        %p1163 = pneg %p368
      $region82: #{grad_desc_forward.2} parent=71 // pred_check_branch
        %1165 = sbr.rel (%p1163) target = $region84
      $region83: #{grad_desc_forward.2} parent=71 // pred_region
        _
      $region84: #{grad_desc_forward.2} parent=71 // pred_fallthru
        _
      // Predicated region
      $region85: #{grad_desc_forward.2} parent=71 // pred_check
        %p1166 = pneg %p394
      $region86: #{grad_desc_forward.2} parent=71 // pred_check_branch
        %1168 = sbr.rel (%p1166) target = $region88
      $region87: #{grad_desc_forward.2} parent=71 // pred_region
        _
      $region88: #{grad_desc_forward.2} parent=71 // pred_fallthru
        _
      // Predicated region
      $region89: #{grad_desc_forward.2} parent=71 // pred_check
        %p1169 = pneg %p420
      $region90: #{grad_desc_forward.2} parent=71 // pred_check_branch
        %1171 = sbr.rel (%p1169) target = $region92
      $region91: #{grad_desc_forward.2} parent=71 // pred_region
        _
      $region92: #{grad_desc_forward.2} parent=71 // pred_fallthru
        _
    $region72: #{grad_desc_forward.2} parent=5 // pred_fallthru
      _
    %p1172 = scmp.le.s32.totalorder 2, %s22
    // Predicated region
    $region93: #{grad_desc_forward.2} parent=5 // pred_check
      %p1173 = pneg %p1172
    $region94: #{grad_desc_forward.2} parent=5 // pred_check_branch
      %1175 = sbr.rel (%p1173) target = $region96
    $region95: #{grad_desc_forward.2} parent=5 // pred_region
      %s1176 = ssub.s32 %s22, 2
      // Predicated region
      $region97: #{grad_desc_forward.2} parent=95 // pred_check
        %p1177 = pneg %p374
      $region98: #{grad_desc_forward.2} parent=95 // pred_check_branch
        %1179 = sbr.rel (%p1177) target = $region100
      $region99: #{grad_desc_forward.2} parent=95 // pred_region
        %p1180 = scmp.lt.s32.totalorder %s33, 1
        %s1181 = scalar_select %p1180, %s33, 1
        %s1182 = smul.addr %s1181, 2
        %s1183 = smul.addr %s1182, 8
        %s1184 = scalar_lea.vmem %s13, %s1183
      $region100: #{grad_desc_forward.2} parent=95 // pred_fallthru
        _
      // Predicated region
      $region101: #{grad_desc_forward.2} parent=95 // pred_check
        %p1185 = pneg %p400
      $region102: #{grad_desc_forward.2} parent=95 // pred_check_branch
        %1187 = sbr.rel (%p1185) target = $region104
      $region103: #{grad_desc_forward.2} parent=95 // pred_region
        %p1188 = scmp.lt.s32.totalorder %s33, 1
        %s1189 = scalar_select %p1188, %s33, 1
        %s1190 = smul.addr %s1189, 2
        %s1191 = smul.addr %s1190, 8
        %s1192 = scalar_lea.vmem %s14, %s1191
      $region104: #{grad_desc_forward.2} parent=95 // pred_fallthru
        _
      // Predicated region
      $region105: #{grad_desc_forward.2} parent=95 // pred_check
        %p1193 = pneg %p426
      $region106: #{grad_desc_forward.2} parent=95 // pred_check_branch
        %1195 = sbr.rel (%p1193) target = $region108
      $region107: #{grad_desc_forward.2} parent=95 // pred_region
        %p1196 = scmp.lt.s32.totalorder %s33, 1
        %s1197 = scalar_select %p1196, %s33, 1
        %s1198 = scalar_lea.vmem %s15, %s1197
      $region108: #{grad_desc_forward.2} parent=95 // pred_fallthru
        _
    $region96: #{grad_desc_forward.2} parent=5 // pred_fallthru
      _
  $region6: #{grad_desc_forward.2} parent=0 // loop_footer
    %s26 = sadd.s32 1, %s22
  $region7: #{grad_desc_forward.2} parent=0 // loop_footer_branch
    %21 = sbr.rel target = $region3
  $region8: #{grad_desc_forward.2} parent=0 // loop_exit
    _

</llo_original>
